<compile_context>
chip_gen: v7x
topology: tpu7x:2x2x1
jax: 0.10.0
libtpu: 0.0.40
codegen_flags: <defaults>
</compile_context>

<pallas_src>
from functools import partial

import jax
import jax.numpy as jnp
from jax import lax
from jax.experimental import pallas as pl
from jax.experimental.pallas import tpu as pltpu

_NEG_BIG = -3.0e38


def _round_up(a, b):
    return (a + b - 1) // b * b


def _vmem_limit_bytes(block_bytes):
    # ~2x for double-buffered pipeline stages plus headroom for compiler-internal scratch,
    # capped so the request stays comfortably inside v7x's 64 MiB physical VMEM.
    return int(min(max(2 * block_bytes + (4 << 20), 16 << 20), 50 << 20))


# --------------------------------------------------------------------------------------
# Pass 1: linear + fused BN statistics + per-group segment max of the (sign-folded) pre-BN
#         activations; finalize BN affine (scale/shift) and the post-BN/ReLU max table.
# --------------------------------------------------------------------------------------
def _pass1_kernel(inv_smem,                                        # scalar prefetch (SMEM)
                  inv2d_ref, x_ref, w_ref, gabs_ref, beta_ref,     # VMEM inputs
                  scale_ref, shift_ref, xmax_ref,                  # outputs
                  sum_scr, sumsq_scr, tbl_scr, y_scr,              # scratch
                  *, tile_n, n_total, u_tbl, eps, vector_scatter):
    t = pl.program_id(0)
    nt = pl.num_programs(0)

    @pl.when(t == 0)
    def _():
        sum_scr[...] = jnp.zeros(sum_scr.shape, sum_scr.dtype)
        sumsq_scr[...] = jnp.zeros(sumsq_scr.shape, sumsq_scr.dtype)
        tbl_scr[...] = jnp.full(tbl_scr.shape, _NEG_BIG, tbl_scr.dtype)

    # Linear (bias=False). sign(gamma) is pre-folded into the weights by the wrapper, so
    # y == sign(gamma) * (inputs @ W^T); bf16 operands on the MXU, f32 accumulation.
    y = jnp.dot(x_ref[...], w_ref[...], preferred_element_type=jnp.float32)  # (tile_n, c_half)

    # Fused BN statistics. Padded tail rows are exact zero input rows -> contribute exactly 0
    # to sum / sum-of-squares, so no masking is needed; we divide by the true N at finalize.
    sum_scr[...] += jnp.sum(y, axis=0, keepdims=True)
    sumsq_scr[...] += jnp.sum(y * y, axis=0, keepdims=True)

    # Per-group segment max of the sign-folded pre-BN activations into a (u_tbl, c_half) table.
    if vector_scatter:
        # Small num_groups: fully vectorized masked max per group (no scalar per-row work).
        inv_vec = inv2d_ref[...]                                    # (tile_n, 1) int32
        for g in range(u_tbl):                                      # static, unrolled
            contrib = jnp.max(jnp.where(inv_vec == g, y, _NEG_BIG),
                              axis=0, keepdims=True)                # (1, c_half)
            tbl_scr[pl.ds(g, 1), :] = jnp.maximum(tbl_scr[pl.ds(g, 1), :], contrib)
    else:
        # Large num_groups: straight-line per-row scatter (no per-row branch; padded rows go
        # to the dummy group row), unrolled so the scheduler can overlap address math.
        y_scr[...] = y
        base = t * tile_n

        def body(i, carry):
            g = inv_smem[base + i]                                  # scalar read from SMEM
            yr = y_scr[pl.ds(i, 1), :]
            tbl_scr[pl.ds(g, 1), :] = jnp.maximum(tbl_scr[pl.ds(g, 1), :], yr)
            return carry

        lax.fori_loop(0, tile_n, body, 0, unroll=8)

    # Finalize: BN affine (training-mode batch stats) and the post-BN/ReLU per-group max table.
    @pl.when(t == nt - 1)
    def _():
        inv_n = jnp.float32(1.0 / n_total)
        mean = sum_scr[...] * inv_n
        # E[y^2] - E[y]^2 can go slightly negative from cancellation -> clamp before rsqrt.
        var = jnp.maximum(sumsq_scr[...] * inv_n - mean * mean, 0.0)
        scale = gabs_ref[...] * lax.rsqrt(var + eps)        # |gamma| * rsqrt (sign is in W)
        shift = beta_ref[...] - mean * scale
        scale_ref[...] = scale
        shift_ref[...] = shift
        # BN affine with scale >= 0 and ReLU are monotone, so the per-group max of
        # relu(scale*y + shift) is reached at the per-group max of y (sign-folded).
        tbl = tbl_scr[...]
        populated = tbl > (_NEG_BIG * 0.5)                  # mask never-populated groups
        xmax_ref[...] = jnp.where(populated,
                                  jnp.maximum(tbl * scale + shift, 0.0),
                                  0.0)


# --------------------------------------------------------------------------------------
# Pass 2: recompute the cheap linear per tile, apply BN affine + ReLU, gather the per-group
#         max (one-hot MXU matmul), and write the concatenated output with a single store.
# --------------------------------------------------------------------------------------
def _pass2_kernel(inv_smem,                                        # scalar prefetch (SMEM)
                  inv2d_ref, x_ref, w_ref, scale_ref, shift_ref, xmax_ref,
                  out_ref,
                  gath_scr,
                  *, tile_n, c_half, u_tbl, onehot_gather):
    y = jnp.dot(x_ref[...], w_ref[...], preferred_element_type=jnp.float32)  # (tile_n, c_half)
    x_act = jnp.maximum(y * scale_ref[...] + shift_ref[...], 0.0)

    if onehot_gather:
        # Vectorized gather: one-hot (tile_n, u_tbl) @ table (u_tbl, c_half) on the MXU.
        # The f32 table is split exactly into hi+lo bf16 parts so the gather stays ~f32 exact.
        inv_vec = inv2d_ref[...]                                            # (tile_n, 1) int32
        col = lax.broadcasted_iota(jnp.int32, (tile_n, u_tbl), 1)
        onehot = jnp.where(inv_vec == col, 1.0, 0.0).astype(jnp.bfloat16)   # exact 0/1
        xmax = xmax_ref[...]                                                # (u_tbl, c_half) f32
        hi = xmax.astype(jnp.bfloat16)
        lo = (xmax - hi.astype(jnp.float32)).astype(jnp.bfloat16)
        gathered = (jnp.dot(onehot, hi, preferred_element_type=jnp.float32)
                    + jnp.dot(onehot, lo, preferred_element_type=jnp.float32))
    else:
        # Fallback for very large num_groups: unrolled per-row dynamic reads from the table.
        base = pl.program_id(0) * tile_n

        def body(i, carry):
            g = inv_smem[base + i]
            gath_scr[pl.ds(i, 1), :] = xmax_ref[pl.ds(g, 1), :]
            return carry

        lax.fori_loop(0, tile_n, body, 0, unroll=8)
        gathered = gath_scr[...]

    # Single full-width store of the concatenated block (no two lane-offset partial writes).
    out_ref[...] = jnp.concatenate([x_act, gathered], axis=1)


# --------------------------------------------------------------------------------------
# Wrapper
# --------------------------------------------------------------------------------------
def pfn_layer_v2(inputs, unq_inv, w, gamma, beta, *, num_groups, eps=1e-3, tile_n=1024,
                 p1_vector_scatter_max_groups=128, p2_onehot_max_groups=2048):
    """inputs: (N, C_in); unq_inv: (N,) int32 group ids in [0, num_groups);
    w: (C_in, C_half); gamma/beta: (C_half,).  Returns (N, 2*C_half) f32."""
    n, c_in = inputs.shape
    c_half = w.shape[1]
    tile_n = max(8, min(_round_up(tile_n, 8), _round_up(n, 8)))
    n_pad = _round_up(n, tile_n)
    nt = n_pad // tile_n
    u_tbl = _round_up(num_groups + 1, 8)       # +1 dummy group row for padded tail rows

    vector_scatter = u_tbl <= p1_vector_scatter_max_groups
    onehot_gather = u_tbl <= p2_onehot_max_groups

    # Fold sign(gamma) into the weights: the kernels work entirely in the "signed" domain
    # (single segment-max table, |gamma| in the affine), which is numerically identical.
    gamma32 = gamma.astype(jnp.float32)
    sg = jnp.sign(gamma32)
    w_signed = (w.astype(jnp.float32) * sg[None, :]).astype(jnp.bfloat16)
    gamma_abs = jnp.abs(gamma32).reshape(1, c_half)
    beta2 = beta.reshape(1, c_half).astype(jnp.float32)

    # bf16 input stream (read by both passes) halves HBM traffic; the matmul was bf16 anyway.
    x = jnp.pad(inputs.astype(jnp.bfloat16), ((0, n_pad - n), (0, 0)))
    inv = jnp.pad(unq_inv.astype(jnp.int32), (0, n_pad - n),
                  constant_values=num_groups)  # padded rows -> dummy group
    inv2d = inv.reshape(n_pad, 1)

    # VMEM budgets from the actual buffer sizes (v7x has only 64 MiB physical per TC).
    p1_bytes = (tile_n * c_in * 2 + tile_n * 4 + c_in * c_half * 2 + 4 * c_half * 4
                + 2 * u_tbl * c_half * 4 + 2 * c_half * 4 + tile_n * c_half * 4)
    p2_bytes = (tile_n * c_in * 2 + tile_n * 4 + c_in * c_half * 2 + 2 * c_half * 4
                + u_tbl * c_half * 4 + tile_n * 2 * c_half * 4 + tile_n * c_half * 4)

    # ---------------- pass 1: BN stats + per-group max table ----------------
    scale, shift, xmax = pl.pallas_call(
        partial(_pass1_kernel, tile_n=tile_n, n_total=n, u_tbl=u_tbl, eps=eps,
                vector_scatter=vector_scatter),
        out_shape=(jax.ShapeDtypeStruct((1, c_half), jnp.float32),
                   jax.ShapeDtypeStruct((1, c_half), jnp.float32),
                   jax.ShapeDtypeStruct((u_tbl, c_half), jnp.float32)),
        grid_spec=pltpu.PrefetchScalarGridSpec(
            num_scalar_prefetch=1,
            grid=(nt,),
            in_specs=[
                pl.BlockSpec((tile_n, 1), lambda t, inv_r: (t, 0)),       # unq_inv (VMEM)
                pl.BlockSpec((tile_n, c_in), lambda t, inv_r: (t, 0)),    # x (bf16)
                pl.BlockSpec((c_in, c_half), lambda t, inv_r: (0, 0)),    # w (bf16, signed)
                pl.BlockSpec((1, c_half), lambda t, inv_r: (0, 0)),       # |gamma|
                pl.BlockSpec((1, c_half), lambda t, inv_r: (0, 0)),       # beta
            ],
            out_specs=[
                pl.BlockSpec((1, c_half), lambda t, inv_r: (0, 0)),
                pl.BlockSpec((1, c_half), lambda t, inv_r: (0, 0)),
                pl.BlockSpec((u_tbl, c_half), lambda t, inv_r: (0, 0)),
            ],
            scratch_shapes=[
                pltpu.VMEM((1, c_half), jnp.float32),            # sum
                pltpu.VMEM((1, c_half), jnp.float32),            # sum of squares
                pltpu.VMEM((u_tbl, c_half), jnp.float32),        # segment-max table
                pltpu.VMEM((tile_n, c_half), jnp.float32),       # y tile (fallback path)
            ]),
        compiler_params=pltpu.CompilerParams(
            dimension_semantics=("arbitrary",),
            vmem_limit_bytes=_vmem_limit_bytes(p1_bytes)),
    )(inv, inv2d, x, w_signed, gamma_abs, beta2)

    # ---------------- pass 2: normalize + ReLU + gather + concat write ----------------
    out = pl.pallas_call(
        partial(_pass2_kernel, tile_n=tile_n, c_half=c_half, u_tbl=u_tbl,
                onehot_gather=onehot_gather),
        out_shape=jax.ShapeDtypeStruct((n_pad, 2 * c_half), jnp.float32),
        grid_spec=pltpu.PrefetchScalarGridSpec(
            num_scalar_prefetch=1,
            grid=(nt,),
            in_specs=[
                pl.BlockSpec((tile_n, 1), lambda t, inv_r: (t, 0)),
                pl.BlockSpec((tile_n, c_in), lambda t, inv_r: (t, 0)),
                pl.BlockSpec((c_in, c_half), lambda t, inv_r: (0, 0)),
                pl.BlockSpec((1, c_half), lambda t, inv_r: (0, 0)),
                pl.BlockSpec((1, c_half), lambda t, inv_r: (0, 0)),
                pl.BlockSpec((u_tbl, c_half), lambda t, inv_r: (0, 0)),
            ],
            out_specs=pl.BlockSpec((tile_n, 2 * c_half), lambda t, inv_r: (t, 0)),
            scratch_shapes=[pltpu.VMEM((tile_n, c_half), jnp.float32)]),
        compiler_params=pltpu.CompilerParams(
            dimension_semantics=("parallel",),
            vmem_limit_bytes=_vmem_limit_bytes(p2_bytes)),
    )(inv, inv2d, x, w_signed, scale, shift, xmax)

    return out[:n]


def pfn_layer_v2_reference(inputs, unq_inv, w, gamma, beta, *, num_groups, eps=1e-3):
    # Matches the kernel's bf16-operand / f32-accumulate linear, then f32 BN/ReLU/segment max.
    y = jnp.dot(inputs.astype(jnp.bfloat16), w.astype(jnp.bfloat16),
                preferred_element_type=jnp.float32)
    mean = y.mean(0, keepdims=True)
    var = ((y - mean) ** 2).mean(0, keepdims=True)
    x = jnp.maximum((y - mean) * lax.rsqrt(var + eps) * gamma + beta, 0.0)
    x_max = jax.ops.segment_max(x, unq_inv, num_segments=num_groups)
    return jnp.concatenate([x, x_max[unq_inv]], axis=1)


if __name__ == "__main__":
    # Small, module-consistent shapes: N points with C_in features, out_channels=64
    # (non-last layer -> internal half width 32), U unique pillars.  N is deliberately not a
    # multiple of the tile size so the padded-tail / dummy-group path is exercised.
    N, C_IN, OUT_CHANNELS, U = 200, 16, 64, 8
    C_HALF = OUT_CHANNELS // 2

    key = jax.random.PRNGKey(0)
    k_x, k_w, k_g, k_b, k_p = jax.random.split(key, 5)

    inputs = jax.random.normal(k_x, (N, C_IN), dtype=jnp.float32)
    # nn.Linear(in_channels, out_channels//2, bias=False) weight, stored as (C_in, C_half)
    w = 0.1 * jax.random.normal(k_w, (C_IN, C_HALF), dtype=jnp.float32)
    # BatchNorm1d affine params (mixed-sign gamma to exercise the sign-folded max table)
    gamma = 1.0 + 1.5 * jax.random.normal(k_g, (C_HALF,), dtype=jnp.float32)
    beta = 0.1 * jax.random.normal(k_b, (C_HALF,), dtype=jnp.float32)
    # unq_inv covering every group at least once, shuffled deterministically
    unq_inv = jax.random.permutation(k_p, jnp.arange(N, dtype=jnp.int32) % U)

    ref = pfn_layer_v2_reference(inputs, unq_inv, w, gamma, beta, num_groups=U)

    # Fast path: vectorized per-tile segment max + one-hot MXU gather.
    out_fast = pfn_layer_v2(inputs, unq_inv, w, gamma, beta, num_groups=U, tile_n=64)
    out_fast = jax.block_until_ready(out_fast)
    assert out_fast.shape == (N, OUT_CHANNELS)
    assert jnp.allclose(out_fast, ref, atol=2e-3, rtol=2e-3), "fast path mismatch vs reference"

    # Fallback path (what very large num_groups would use): unrolled per-row scatter/gather.
    out_loop = pfn_layer_v2(inputs, unq_inv, w, gamma, beta, num_groups=U, tile_n=64,
                            p1_vector_scatter_max_groups=0, p2_onehot_max_groups=0)
    out_loop = jax.block_until_ready(out_loop)
    assert jnp.allclose(out_loop, ref, atol=2e-3, rtol=2e-3), "fallback path mismatch vs reference"

    print("KERNEL_OK")
</pallas_src>

<mosaic_0001>
module attributes {stable_mosaic.version = 11 : i64} {
  func.func @_pass1_kernel(%arg0: i32, %arg1: memref<256xi32, #tpu.memory_space<smem>>, %arg2: memref<64x1xi32, #tpu.memory_space<vmem>>, %arg3: memref<64x16xbf16, #tpu.memory_space<vmem>>, %arg4: memref<16x32xbf16, #tpu.memory_space<vmem>>, %arg5: memref<1x32xf32, #tpu.memory_space<vmem>>, %arg6: memref<1x32xf32, #tpu.memory_space<vmem>>, %arg7: memref<1x32xf32, #tpu.memory_space<vmem>>, %arg8: memref<1x32xf32, #tpu.memory_space<vmem>>, %arg9: memref<16x32xf32, #tpu.memory_space<vmem>>, %arg10: memref<1x32xf32, #tpu.memory_space<vmem>>, %arg11: memref<1x32xf32, #tpu.memory_space<vmem>>, %arg12: memref<16x32xf32, #tpu.memory_space<vmem>>, %arg13: memref<64x32xf32, #tpu.memory_space<vmem>>) attributes {dimension_semantics = [#tpu.dimension_semantics<arbitrary>], iteration_bounds = array<i64: 4>, scalar_prefetch = 1 : i64, scratch_operands = 4 : i64, tpu.core_type = #tpu.core_type<tc>, window_params = [{transform_indices = @transform_0, window_bounds = array<i64: 64, 1>}, {transform_indices = @transform_1, window_bounds = array<i64: 64, 16>}, {pipeline_mode = #tpu.pipeline_mode<synchronous>, transform_indices = @transform_2, window_bounds = array<i64: 16, 32>}, {pipeline_mode = #tpu.pipeline_mode<synchronous>, transform_indices = @transform_3, window_bounds = array<i64: 1, 32>}, {pipeline_mode = #tpu.pipeline_mode<synchronous>, transform_indices = @transform_4, window_bounds = array<i64: 1, 32>}, {pipeline_mode = #tpu.pipeline_mode<synchronous>, transform_indices = @transform_5, window_bounds = array<i64: 1, 32>}, {pipeline_mode = #tpu.pipeline_mode<synchronous>, transform_indices = @transform_6, window_bounds = array<i64: 1, 32>}, {pipeline_mode = #tpu.pipeline_mode<synchronous>, transform_indices = @transform_7, window_bounds = array<i64: 16, 32>}]} {
    %c0_i32 = arith.constant 0 : i32
    %0 = arith.cmpi eq, %arg0, %c0_i32 : i32
    %1 = arith.extui %0 : i1 to i32
    %c0_i32_0 = arith.constant 0 : i32
    %2 = arith.cmpi ne, %1, %c0_i32_0 : i32
    scf.if %2 {
      %cst_100 = arith.constant 0.000000e+00 : f32
      %197 = vector.broadcast %cst_100 : f32 to vector<1x32xf32>
      %c0_101 = arith.constant 0 : index
      %c0_102 = arith.constant 0 : index
      %198 = vector.load %arg10[%c0_101, %c0_102] : memref<1x32xf32, #tpu.memory_space<vmem>>, vector<1x32xf32>
      tpu.vector_store %arg10[%c0_101, %c0_102], %197 {strides = array<i32>} : memref<1x32xf32, #tpu.memory_space<vmem>>, vector<1x32xf32>,
      %cst_103 = arith.constant 0.000000e+00 : f32
      %199 = vector.broadcast %cst_103 : f32 to vector<1x32xf32>
      %c0_104 = arith.constant 0 : index
      %c0_105 = arith.constant 0 : index
      %200 = vector.load %arg11[%c0_104, %c0_105] : memref<1x32xf32, #tpu.memory_space<vmem>>, vector<1x32xf32>
      tpu.vector_store %arg11[%c0_104, %c0_105], %199 {strides = array<i32>} : memref<1x32xf32, #tpu.memory_space<vmem>>, vector<1x32xf32>,
      %cst_106 = arith.constant -3.000000e+38 : f32
      %201 = vector.broadcast %cst_106 : f32 to vector<16x32xf32>
      %c0_107 = arith.constant 0 : index
      %c0_108 = arith.constant 0 : index
      %202 = vector.load %arg12[%c0_107, %c0_108] : memref<16x32xf32, #tpu.memory_space<vmem>>, vector<16x32xf32>
      tpu.vector_store %arg12[%c0_107, %c0_108], %201 {strides = array<i32>} : memref<16x32xf32, #tpu.memory_space<vmem>>, vector<16x32xf32>,
    } else {
    }
    %c0 = arith.constant 0 : index
    %c0_1 = arith.constant 0 : index
    %3 = vector.load %arg3[%c0, %c0_1] : memref<64x16xbf16, #tpu.memory_space<vmem>>, vector<64x16xbf16>
    %c0_2 = arith.constant 0 : index
    %c0_3 = arith.constant 0 : index
    %4 = vector.load %arg4[%c0_2, %c0_3] : memref<16x32xbf16, #tpu.memory_space<vmem>>, vector<16x32xbf16>
    %cst = arith.constant dense<0.000000e+00> : vector<64x32xf32>
    %5 = tpu.matmul %3, %4, %cst {dimension_numbers = #tpu.dot_dimension_numbers<[1], [0], [0], [1], [0, 0, 1, 1], [], []>} : vector<64x16xbf16>, vector<16x32xbf16>, vector<64x32xf32> -> vector<64x32xf32>
    %c0_4 = arith.constant 0 : index
    %c0_5 = arith.constant 0 : index
    %6 = vector.load %arg10[%c0_4, %c0_5] : memref<1x32xf32, #tpu.memory_space<vmem>>, vector<1x32xf32>
    %cst_6 = arith.constant dense<0.000000e+00> : vector<32xf32>
    %7 = vector.multi_reduction <add>, %5, %cst_6 [0] : vector<64x32xf32> to vector<32xf32>
    %8 = vector.shape_cast %7 : vector<32xf32> to vector<1x32xf32>
    %9 = arith.addf %6, %8 : vector<1x32xf32>
    %c0_7 = arith.constant 0 : index
    %c0_8 = arith.constant 0 : index
    %10 = vector.load %arg10[%c0_7, %c0_8] : memref<1x32xf32, #tpu.memory_space<vmem>>, vector<1x32xf32>
    tpu.vector_store %arg10[%c0_7, %c0_8], %9 {strides = array<i32>} : memref<1x32xf32, #tpu.memory_space<vmem>>, vector<1x32xf32>,
    %c0_9 = arith.constant 0 : index
    %c0_10 = arith.constant 0 : index
    %11 = vector.load %arg11[%c0_9, %c0_10] : memref<1x32xf32, #tpu.memory_space<vmem>>, vector<1x32xf32>
    %12 = arith.mulf %5, %5 : vector<64x32xf32>
    %cst_11 = arith.constant dense<0.000000e+00> : vector<32xf32>
    %13 = vector.multi_reduction <add>, %12, %cst_11 [0] : vector<64x32xf32> to vector<32xf32>
    %14 = vector.shape_cast %13 : vector<32xf32> to vector<1x32xf32>
    %15 = arith.addf %11, %14 : vector<1x32xf32>
    %c0_12 = arith.constant 0 : index
    %c0_13 = arith.constant 0 : index
    %16 = vector.load %arg11[%c0_12, %c0_13] : memref<1x32xf32, #tpu.memory_space<vmem>>, vector<1x32xf32>
    tpu.vector_store %arg11[%c0_12, %c0_13], %15 {strides = array<i32>} : memref<1x32xf32, #tpu.memory_space<vmem>>, vector<1x32xf32>,
    %c0_14 = arith.constant 0 : index
    %c0_15 = arith.constant 0 : index
    %17 = vector.load %arg2[%c0_14, %c0_15] : memref<64x1xi32, #tpu.memory_space<vmem>>, vector<64x1xi32>
    %c0_i32_16 = arith.constant 0 : i32
    %18 = vector.broadcast %c0_i32_16 : i32 to vector<64x1xi32>
    %19 = arith.cmpi eq, %17, %18 : vector<64x1xi32>
    %cst_17 = arith.constant -3.000000e+38 : f32
    %20 = vector.shape_cast %19 : vector<64x1xi1> to vector<64x1xi1>
    %21 = vector.broadcast %20 : vector<64x1xi1> to vector<64x32xi1>
    %22 = vector.broadcast %cst_17 : f32 to vector<64x32xf32>
    %23 = arith.select %21, %5, %22 : vector<64x32xi1>, vector<64x32xf32>
    %cst_18 = arith.constant dense<0xFF800000> : vector<32xf32>
    %24 = vector.multi_reduction <maximumf>, %23, %cst_18 [0] : vector<64x32xf32> to vector<32xf32>
    %25 = vector.shape_cast %24 : vector<32xf32> to vector<1x32xf32>
    %c0_19 = arith.constant 0 : index
    %c0_20 = arith.constant 0 : index
    %26 = vector.load %arg12[%c0_19, %c0_20] : memref<16x32xf32, #tpu.memory_space<vmem>>, vector<1x32xf32>
    %27 = arith.maximumf %26, %25 : vector<1x32xf32>
    %c0_21 = arith.constant 0 : index
    %c0_22 = arith.constant 0 : index
    %28 = vector.load %arg12[%c0_21, %c0_22] : memref<16x32xf32, #tpu.memory_space<vmem>>, vector<1x32xf32>
    tpu.vector_store %arg12[%c0_21, %c0_22], %27 {strides = array<i32>} : memref<16x32xf32, #tpu.memory_space<vmem>>, vector<1x32xf32>,
    %c1_i32 = arith.constant 1 : i32
    %29 = vector.broadcast %c1_i32 : i32 to vector<64x1xi32>
    %30 = arith.cmpi eq, %17, %29 : vector<64x1xi32>
    %cst_23 = arith.constant -3.000000e+38 : f32
    %31 = vector.shape_cast %30 : vector<64x1xi1> to vector<64x1xi1>
    %32 = vector.broadcast %31 : vector<64x1xi1> to vector<64x32xi1>
    %33 = vector.broadcast %cst_23 : f32 to vector<64x32xf32>
    %34 = arith.select %32, %5, %33 : vector<64x32xi1>, vector<64x32xf32>
    %cst_24 = arith.constant dense<0xFF800000> : vector<32xf32>
    %35 = vector.multi_reduction <maximumf>, %34, %cst_24 [0] : vector<64x32xf32> to vector<32xf32>
    %36 = vector.shape_cast %35 : vector<32xf32> to vector<1x32xf32>
    %c1 = arith.constant 1 : index
    %c0_25 = arith.constant 0 : index
    %37 = vector.load %arg12[%c1, %c0_25] : memref<16x32xf32, #tpu.memory_space<vmem>>, vector<1x32xf32>
    %38 = arith.maximumf %37, %36 : vector<1x32xf32>
    %c1_26 = arith.constant 1 : index
    %c0_27 = arith.constant 0 : index
    %39 = vector.load %arg12[%c1_26, %c0_27] : memref<16x32xf32, #tpu.memory_space<vmem>>, vector<1x32xf32>
    tpu.vector_store %arg12[%c1_26, %c0_27], %38 {strides = array<i32>} : memref<16x32xf32, #tpu.memory_space<vmem>>, vector<1x32xf32>,
    %c2_i32 = arith.constant 2 : i32
    %40 = vector.broadcast %c2_i32 : i32 to vector<64x1xi32>
    %41 = arith.cmpi eq, %17, %40 : vector<64x1xi32>
    %cst_28 = arith.constant -3.000000e+38 : f32
    %42 = vector.shape_cast %41 : vector<64x1xi1> to vector<64x1xi1>
    %43 = vector.broadcast %42 : vector<64x1xi1> to vector<64x32xi1>
    %44 = vector.broadcast %cst_28 : f32 to vector<64x32xf32>
    %45 = arith.select %43, %5, %44 : vector<64x32xi1>, vector<64x32xf32>
    %cst_29 = arith.constant dense<0xFF800000> : vector<32xf32>
    %46 = vector.multi_reduction <maximumf>, %45, %cst_29 [0] : vector<64x32xf32> to vector<32xf32>
    %47 = vector.shape_cast %46 : vector<32xf32> to vector<1x32xf32>
    %c2 = arith.constant 2 : index
    %c0_30 = arith.constant 0 : index
    %48 = vector.load %arg12[%c2, %c0_30] : memref<16x32xf32, #tpu.memory_space<vmem>>, vector<1x32xf32>
    %49 = arith.maximumf %48, %47 : vector<1x32xf32>
    %c2_31 = arith.constant 2 : index
    %c0_32 = arith.constant 0 : index
    %50 = vector.load %arg12[%c2_31, %c0_32] : memref<16x32xf32, #tpu.memory_space<vmem>>, vector<1x32xf32>
    tpu.vector_store %arg12[%c2_31, %c0_32], %49 {strides = array<i32>} : memref<16x32xf32, #tpu.memory_space<vmem>>, vector<1x32xf32>,
    %c3_i32 = arith.constant 3 : i32
    %51 = vector.broadcast %c3_i32 : i32 to vector<64x1xi32>
    %52 = arith.cmpi eq, %17, %51 : vector<64x1xi32>
    %cst_33 = arith.constant -3.000000e+38 : f32
    %53 = vector.shape_cast %52 : vector<64x1xi1> to vector<64x1xi1>
    %54 = vector.broadcast %53 : vector<64x1xi1> to vector<64x32xi1>
    %55 = vector.broadcast %cst_33 : f32 to vector<64x32xf32>
    %56 = arith.select %54, %5, %55 : vector<64x32xi1>, vector<64x32xf32>
    %cst_34 = arith.constant dense<0xFF800000> : vector<32xf32>
    %57 = vector.multi_reduction <maximumf>, %56, %cst_34 [0] : vector<64x32xf32> to vector<32xf32>
    %58 = vector.shape_cast %57 : vector<32xf32> to vector<1x32xf32>
    %c3 = arith.constant 3 : index
    %c0_35 = arith.constant 0 : index
    %59 = vector.load %arg12[%c3, %c0_35] : memref<16x32xf32, #tpu.memory_space<vmem>>, vector<1x32xf32>
    %60 = arith.maximumf %59, %58 : vector<1x32xf32>
    %c3_36 = arith.constant 3 : index
    %c0_37 = arith.constant 0 : index
    %61 = vector.load %arg12[%c3_36, %c0_37] : memref<16x32xf32, #tpu.memory_space<vmem>>, vector<1x32xf32>
    tpu.vector_store %arg12[%c3_36, %c0_37], %60 {strides = array<i32>} : memref<16x32xf32, #tpu.memory_space<vmem>>, vector<1x32xf32>,
    %c4_i32 = arith.constant 4 : i32
    %62 = vector.broadcast %c4_i32 : i32 to vector<64x1xi32>
    %63 = arith.cmpi eq, %17, %62 : vector<64x1xi32>
    %cst_38 = arith.constant -3.000000e+38 : f32
    %64 = vector.shape_cast %63 : vector<64x1xi1> to vector<64x1xi1>
    %65 = vector.broadcast %64 : vector<64x1xi1> to vector<64x32xi1>
    %66 = vector.broadcast %cst_38 : f32 to vector<64x32xf32>
    %67 = arith.select %65, %5, %66 : vector<64x32xi1>, vector<64x32xf32>
    %cst_39 = arith.constant dense<0xFF800000> : vector<32xf32>
    %68 = vector.multi_reduction <maximumf>, %67, %cst_39 [0] : vector<64x32xf32> to vector<32xf32>
    %69 = vector.shape_cast %68 : vector<32xf32> to vector<1x32xf32>
    %c4 = arith.constant 4 : index
    %c0_40 = arith.constant 0 : index
    %70 = vector.load %arg12[%c4, %c0_40] : memref<16x32xf32, #tpu.memory_space<vmem>>, vector<1x32xf32>
    %71 = arith.maximumf %70, %69 : vector<1x32xf32>
    %c4_41 = arith.constant 4 : index
    %c0_42 = arith.constant 0 : index
    %72 = vector.load %arg12[%c4_41, %c0_42] : memref<16x32xf32, #tpu.memory_space<vmem>>, vector<1x32xf32>
    tpu.vector_store %arg12[%c4_41, %c0_42], %71 {strides = array<i32>} : memref<16x32xf32, #tpu.memory_space<vmem>>, vector<1x32xf32>,
    %c5_i32 = arith.constant 5 : i32
    %73 = vector.broadcast %c5_i32 : i32 to vector<64x1xi32>
    %74 = arith.cmpi eq, %17, %73 : vector<64x1xi32>
    %cst_43 = arith.constant -3.000000e+38 : f32
    %75 = vector.shape_cast %74 : vector<64x1xi1> to vector<64x1xi1>
    %76 = vector.broadcast %75 : vector<64x1xi1> to vector<64x32xi1>
    %77 = vector.broadcast %cst_43 : f32 to vector<64x32xf32>
    %78 = arith.select %76, %5, %77 : vector<64x32xi1>, vector<64x32xf32>
    %cst_44 = arith.constant dense<0xFF800000> : vector<32xf32>
    %79 = vector.multi_reduction <maximumf>, %78, %cst_44 [0] : vector<64x32xf32> to vector<32xf32>
    %80 = vector.shape_cast %79 : vector<32xf32> to vector<1x32xf32>
    %c5 = arith.constant 5 : index
    %c0_45 = arith.constant 0 : index
    %81 = vector.load %arg12[%c5, %c0_45] : memref<16x32xf32, #tpu.memory_space<vmem>>, vector<1x32xf32>
    %82 = arith.maximumf %81, %80 : vector<1x32xf32>
    %c5_46 = arith.constant 5 : index
    %c0_47 = arith.constant 0 : index
    %83 = vector.load %arg12[%c5_46, %c0_47] : memref<16x32xf32, #tpu.memory_space<vmem>>, vector<1x32xf32>
    tpu.vector_store %arg12[%c5_46, %c0_47], %82 {strides = array<i32>} : memref<16x32xf32, #tpu.memory_space<vmem>>, vector<1x32xf32>,
    %c6_i32 = arith.constant 6 : i32
    %84 = vector.broadcast %c6_i32 : i32 to vector<64x1xi32>
    %85 = arith.cmpi eq, %17, %84 : vector<64x1xi32>
    %cst_48 = arith.constant -3.000000e+38 : f32
    %86 = vector.shape_cast %85 : vector<64x1xi1> to vector<64x1xi1>
    %87 = vector.broadcast %86 : vector<64x1xi1> to vector<64x32xi1>
    %88 = vector.broadcast %cst_48 : f32 to vector<64x32xf32>
    %89 = arith.select %87, %5, %88 : vector<64x32xi1>, vector<64x32xf32>
    %cst_49 = arith.constant dense<0xFF800000> : vector<32xf32>
    %90 = vector.multi_reduction <maximumf>, %89, %cst_49 [0] : vector<64x32xf32> to vector<32xf32>
    %91 = vector.shape_cast %90 : vector<32xf32> to vector<1x32xf32>
    %c6 = arith.constant 6 : index
    %c0_50 = arith.constant 0 : index
    %92 = vector.load %arg12[%c6, %c0_50] : memref<16x32xf32, #tpu.memory_space<vmem>>, vector<1x32xf32>
    %93 = arith.maximumf %92, %91 : vector<1x32xf32>
    %c6_51 = arith.constant 6 : index
    %c0_52 = arith.constant 0 : index
    %94 = vector.load %arg12[%c6_51, %c0_52] : memref<16x32xf32, #tpu.memory_space<vmem>>, vector<1x32xf32>
    tpu.vector_store %arg12[%c6_51, %c0_52], %93 {strides = array<i32>} : memref<16x32xf32, #tpu.memory_space<vmem>>, vector<1x32xf32>,
    %c7_i32 = arith.constant 7 : i32
    %95 = vector.broadcast %c7_i32 : i32 to vector<64x1xi32>
    %96 = arith.cmpi eq, %17, %95 : vector<64x1xi32>
    %cst_53 = arith.constant -3.000000e+38 : f32
    %97 = vector.shape_cast %96 : vector<64x1xi1> to vector<64x1xi1>
    %98 = vector.broadcast %97 : vector<64x1xi1> to vector<64x32xi1>
    %99 = vector.broadcast %cst_53 : f32 to vector<64x32xf32>
    %100 = arith.select %98, %5, %99 : vector<64x32xi1>, vector<64x32xf32>
    %cst_54 = arith.constant dense<0xFF800000> : vector<32xf32>
    %101 = vector.multi_reduction <maximumf>, %100, %cst_54 [0] : vector<64x32xf32> to vector<32xf32>
    %102 = vector.shape_cast %101 : vector<32xf32> to vector<1x32xf32>
    %c7 = arith.constant 7 : index
    %c0_55 = arith.constant 0 : index
    %103 = vector.load %arg12[%c7, %c0_55] : memref<16x32xf32, #tpu.memory_space<vmem>>, vector<1x32xf32>
    %104 = arith.maximumf %103, %102 : vector<1x32xf32>
    %c7_56 = arith.constant 7 : index
    %c0_57 = arith.constant 0 : index
    %105 = vector.load %arg12[%c7_56, %c0_57] : memref<16x32xf32, #tpu.memory_space<vmem>>, vector<1x32xf32>
    tpu.vector_store %arg12[%c7_56, %c0_57], %104 {strides = array<i32>} : memref<16x32xf32, #tpu.memory_space<vmem>>, vector<1x32xf32>,
    %c8_i32 = arith.constant 8 : i32
    %106 = vector.broadcast %c8_i32 : i32 to vector<64x1xi32>
    %107 = arith.cmpi eq, %17, %106 : vector<64x1xi32>
    %cst_58 = arith.constant -3.000000e+38 : f32
    %108 = vector.shape_cast %107 : vector<64x1xi1> to vector<64x1xi1>
    %109 = vector.broadcast %108 : vector<64x1xi1> to vector<64x32xi1>
    %110 = vector.broadcast %cst_58 : f32 to vector<64x32xf32>
    %111 = arith.select %109, %5, %110 : vector<64x32xi1>, vector<64x32xf32>
    %cst_59 = arith.constant dense<0xFF800000> : vector<32xf32>
    %112 = vector.multi_reduction <maximumf>, %111, %cst_59 [0] : vector<64x32xf32> to vector<32xf32>
    %113 = vector.shape_cast %112 : vector<32xf32> to vector<1x32xf32>
    %c8 = arith.constant 8 : index
    %c0_60 = arith.constant 0 : index
    %114 = vector.load %arg12[%c8, %c0_60] : memref<16x32xf32, #tpu.memory_space<vmem>>, vector<1x32xf32>
    %115 = arith.maximumf %114, %113 : vector<1x32xf32>
    %c8_61 = arith.constant 8 : index
    %c0_62 = arith.constant 0 : index
    %116 = vector.load %arg12[%c8_61, %c0_62] : memref<16x32xf32, #tpu.memory_space<vmem>>, vector<1x32xf32>
    tpu.vector_store %arg12[%c8_61, %c0_62], %115 {strides = array<i32>} : memref<16x32xf32, #tpu.memory_space<vmem>>, vector<1x32xf32>,
    %c9_i32 = arith.constant 9 : i32
    %117 = vector.broadcast %c9_i32 : i32 to vector<64x1xi32>
    %118 = arith.cmpi eq, %17, %117 : vector<64x1xi32>
    %cst_63 = arith.constant -3.000000e+38 : f32
    %119 = vector.shape_cast %118 : vector<64x1xi1> to vector<64x1xi1>
    %120 = vector.broadcast %119 : vector<64x1xi1> to vector<64x32xi1>
    %121 = vector.broadcast %cst_63 : f32 to vector<64x32xf32>
    %122 = arith.select %120, %5, %121 : vector<64x32xi1>, vector<64x32xf32>
    %cst_64 = arith.constant dense<0xFF800000> : vector<32xf32>
    %123 = vector.multi_reduction <maximumf>, %122, %cst_64 [0] : vector<64x32xf32> to vector<32xf32>
    %124 = vector.shape_cast %123 : vector<32xf32> to vector<1x32xf32>
    %c9 = arith.constant 9 : index
    %c0_65 = arith.constant 0 : index
    %125 = vector.load %arg12[%c9, %c0_65] : memref<16x32xf32, #tpu.memory_space<vmem>>, vector<1x32xf32>
    %126 = arith.maximumf %125, %124 : vector<1x32xf32>
    %c9_66 = arith.constant 9 : index
    %c0_67 = arith.constant 0 : index
    %127 = vector.load %arg12[%c9_66, %c0_67] : memref<16x32xf32, #tpu.memory_space<vmem>>, vector<1x32xf32>
    tpu.vector_store %arg12[%c9_66, %c0_67], %126 {strides = array<i32>} : memref<16x32xf32, #tpu.memory_space<vmem>>, vector<1x32xf32>,
    %c10_i32 = arith.constant 10 : i32
    %128 = vector.broadcast %c10_i32 : i32 to vector<64x1xi32>
    %129 = arith.cmpi eq, %17, %128 : vector<64x1xi32>
    %cst_68 = arith.constant -3.000000e+38 : f32
    %130 = vector.shape_cast %129 : vector<64x1xi1> to vector<64x1xi1>
    %131 = vector.broadcast %130 : vector<64x1xi1> to vector<64x32xi1>
    %132 = vector.broadcast %cst_68 : f32 to vector<64x32xf32>
    %133 = arith.select %131, %5, %132 : vector<64x32xi1>, vector<64x32xf32>
    %cst_69 = arith.constant dense<0xFF800000> : vector<32xf32>
    %134 = vector.multi_reduction <maximumf>, %133, %cst_69 [0] : vector<64x32xf32> to vector<32xf32>
    %135 = vector.shape_cast %134 : vector<32xf32> to vector<1x32xf32>
    %c10 = arith.constant 10 : index
    %c0_70 = arith.constant 0 : index
    %136 = vector.load %arg12[%c10, %c0_70] : memref<16x32xf32, #tpu.memory_space<vmem>>, vector<1x32xf32>
    %137 = arith.maximumf %136, %135 : vector<1x32xf32>
    %c10_71 = arith.constant 10 : index
    %c0_72 = arith.constant 0 : index
    %138 = vector.load %arg12[%c10_71, %c0_72] : memref<16x32xf32, #tpu.memory_space<vmem>>, vector<1x32xf32>
    tpu.vector_store %arg12[%c10_71, %c0_72], %137 {strides = array<i32>} : memref<16x32xf32, #tpu.memory_space<vmem>>, vector<1x32xf32>,
    %c11_i32 = arith.constant 11 : i32
    %139 = vector.broadcast %c11_i32 : i32 to vector<64x1xi32>
    %140 = arith.cmpi eq, %17, %139 : vector<64x1xi32>
    %cst_73 = arith.constant -3.000000e+38 : f32
    %141 = vector.shape_cast %140 : vector<64x1xi1> to vector<64x1xi1>
    %142 = vector.broadcast %141 : vector<64x1xi1> to vector<64x32xi1>
    %143 = vector.broadcast %cst_73 : f32 to vector<64x32xf32>
    %144 = arith.select %142, %5, %143 : vector<64x32xi1>, vector<64x32xf32>
    %cst_74 = arith.constant dense<0xFF800000> : vector<32xf32>
    %145 = vector.multi_reduction <maximumf>, %144, %cst_74 [0] : vector<64x32xf32> to vector<32xf32>
    %146 = vector.shape_cast %145 : vector<32xf32> to vector<1x32xf32>
    %c11 = arith.constant 11 : index
    %c0_75 = arith.constant 0 : index
    %147 = vector.load %arg12[%c11, %c0_75] : memref<16x32xf32, #tpu.memory_space<vmem>>, vector<1x32xf32>
    %148 = arith.maximumf %147, %146 : vector<1x32xf32>
    %c11_76 = arith.constant 11 : index
    %c0_77 = arith.constant 0 : index
    %149 = vector.load %arg12[%c11_76, %c0_77] : memref<16x32xf32, #tpu.memory_space<vmem>>, vector<1x32xf32>
    tpu.vector_store %arg12[%c11_76, %c0_77], %148 {strides = array<i32>} : memref<16x32xf32, #tpu.memory_space<vmem>>, vector<1x32xf32>,
    %c12_i32 = arith.constant 12 : i32
    %150 = vector.broadcast %c12_i32 : i32 to vector<64x1xi32>
    %151 = arith.cmpi eq, %17, %150 : vector<64x1xi32>
    %cst_78 = arith.constant -3.000000e+38 : f32
    %152 = vector.shape_cast %151 : vector<64x1xi1> to vector<64x1xi1>
    %153 = vector.broadcast %152 : vector<64x1xi1> to vector<64x32xi1>
    %154 = vector.broadcast %cst_78 : f32 to vector<64x32xf32>
    %155 = arith.select %153, %5, %154 : vector<64x32xi1>, vector<64x32xf32>
    %cst_79 = arith.constant dense<0xFF800000> : vector<32xf32>
    %156 = vector.multi_reduction <maximumf>, %155, %cst_79 [0] : vector<64x32xf32> to vector<32xf32>
    %157 = vector.shape_cast %156 : vector<32xf32> to vector<1x32xf32>
    %c12 = arith.constant 12 : index
    %c0_80 = arith.constant 0 : index
    %158 = vector.load %arg12[%c12, %c0_80] : memref<16x32xf32, #tpu.memory_space<vmem>>, vector<1x32xf32>
    %159 = arith.maximumf %158, %157 : vector<1x32xf32>
    %c12_81 = arith.constant 12 : index
    %c0_82 = arith.constant 0 : index
    %160 = vector.load %arg12[%c12_81, %c0_82] : memref<16x32xf32, #tpu.memory_space<vmem>>, vector<1x32xf32>
    tpu.vector_store %arg12[%c12_81, %c0_82], %159 {strides = array<i32>} : memref<16x32xf32, #tpu.memory_space<vmem>>, vector<1x32xf32>,
    %c13_i32 = arith.constant 13 : i32
    %161 = vector.broadcast %c13_i32 : i32 to vector<64x1xi32>
    %162 = arith.cmpi eq, %17, %161 : vector<64x1xi32>
    %cst_83 = arith.constant -3.000000e+38 : f32
    %163 = vector.shape_cast %162 : vector<64x1xi1> to vector<64x1xi1>
    %164 = vector.broadcast %163 : vector<64x1xi1> to vector<64x32xi1>
    %165 = vector.broadcast %cst_83 : f32 to vector<64x32xf32>
    %166 = arith.select %164, %5, %165 : vector<64x32xi1>, vector<64x32xf32>
    %cst_84 = arith.constant dense<0xFF800000> : vector<32xf32>
    %167 = vector.multi_reduction <maximumf>, %166, %cst_84 [0] : vector<64x32xf32> to vector<32xf32>
    %168 = vector.shape_cast %167 : vector<32xf32> to vector<1x32xf32>
    %c13 = arith.constant 13 : index
    %c0_85 = arith.constant 0 : index
    %169 = vector.load %arg12[%c13, %c0_85] : memref<16x32xf32, #tpu.memory_space<vmem>>, vector<1x32xf32>
    %170 = arith.maximumf %169, %168 : vector<1x32xf32>
    %c13_86 = arith.constant 13 : index
    %c0_87 = arith.constant 0 : index
    %171 = vector.load %arg12[%c13_86, %c0_87] : memref<16x32xf32, #tpu.memory_space<vmem>>, vector<1x32xf32>
    tpu.vector_store %arg12[%c13_86, %c0_87], %170 {strides = array<i32>} : memref<16x32xf32, #tpu.memory_space<vmem>>, vector<1x32xf32>,
    %c14_i32 = arith.constant 14 : i32
    %172 = vector.broadcast %c14_i32 : i32 to vector<64x1xi32>
    %173 = arith.cmpi eq, %17, %172 : vector<64x1xi32>
    %cst_88 = arith.constant -3.000000e+38 : f32
    %174 = vector.shape_cast %173 : vector<64x1xi1> to vector<64x1xi1>
    %175 = vector.broadcast %174 : vector<64x1xi1> to vector<64x32xi1>
    %176 = vector.broadcast %cst_88 : f32 to vector<64x32xf32>
    %177 = arith.select %175, %5, %176 : vector<64x32xi1>, vector<64x32xf32>
    %cst_89 = arith.constant dense<0xFF800000> : vector<32xf32>
    %178 = vector.multi_reduction <maximumf>, %177, %cst_89 [0] : vector<64x32xf32> to vector<32xf32>
    %179 = vector.shape_cast %178 : vector<32xf32> to vector<1x32xf32>
    %c14 = arith.constant 14 : index
    %c0_90 = arith.constant 0 : index
    %180 = vector.load %arg12[%c14, %c0_90] : memref<16x32xf32, #tpu.memory_space<vmem>>, vector<1x32xf32>
    %181 = arith.maximumf %180, %179 : vector<1x32xf32>
    %c14_91 = arith.constant 14 : index
    %c0_92 = arith.constant 0 : index
    %182 = vector.load %arg12[%c14_91, %c0_92] : memref<16x32xf32, #tpu.memory_space<vmem>>, vector<1x32xf32>
    tpu.vector_store %arg12[%c14_91, %c0_92], %181 {strides = array<i32>} : memref<16x32xf32, #tpu.memory_space<vmem>>, vector<1x32xf32>,
    %c15_i32 = arith.constant 15 : i32
    %183 = vector.broadcast %c15_i32 : i32 to vector<64x1xi32>
    %184 = arith.cmpi eq, %17, %183 : vector<64x1xi32>
    %cst_93 = arith.constant -3.000000e+38 : f32
    %185 = vector.shape_cast %184 : vector<64x1xi1> to vector<64x1xi1>
    %186 = vector.broadcast %185 : vector<64x1xi1> to vector<64x32xi1>
    %187 = vector.broadcast %cst_93 : f32 to vector<64x32xf32>
    %188 = arith.select %186, %5, %187 : vector<64x32xi1>, vector<64x32xf32>
    %cst_94 = arith.constant dense<0xFF800000> : vector<32xf32>
    %189 = vector.multi_reduction <maximumf>, %188, %cst_94 [0] : vector<64x32xf32> to vector<32xf32>
    %190 = vector.shape_cast %189 : vector<32xf32> to vector<1x32xf32>
    %c15 = arith.constant 15 : index
    %c0_95 = arith.constant 0 : index
    %191 = vector.load %arg12[%c15, %c0_95] : memref<16x32xf32, #tpu.memory_space<vmem>>, vector<1x32xf32>
    %192 = arith.maximumf %191, %190 : vector<1x32xf32>
    %c15_96 = arith.constant 15 : index
    %c0_97 = arith.constant 0 : index
    %193 = vector.load %arg12[%c15_96, %c0_97] : memref<16x32xf32, #tpu.memory_space<vmem>>, vector<1x32xf32>
    tpu.vector_store %arg12[%c15_96, %c0_97], %192 {strides = array<i32>} : memref<16x32xf32, #tpu.memory_space<vmem>>, vector<1x32xf32>,
    %c3_i32_98 = arith.constant 3 : i32
    %194 = arith.cmpi eq, %arg0, %c3_i32_98 : i32
    %195 = arith.extui %194 : i1 to i32
    %c0_i32_99 = arith.constant 0 : i32
    %196 = arith.cmpi ne, %195, %c0_i32_99 : i32
    scf.if %196 {
      %c0_100 = arith.constant 0 : index
      %c0_101 = arith.constant 0 : index
      %197 = vector.load %arg10[%c0_100, %c0_101] : memref<1x32xf32, #tpu.memory_space<vmem>>, vector<1x32xf32>
      %cst_102 = arith.constant 5.000000e-03 : f32
      %198 = vector.broadcast %cst_102 : f32 to vector<1x32xf32>
      %199 = arith.mulf %197, %198 : vector<1x32xf32>
      %c0_103 = arith.constant 0 : index
      %c0_104 = arith.constant 0 : index
      %200 = vector.load %arg11[%c0_103, %c0_104] : memref<1x32xf32, #tpu.memory_space<vmem>>, vector<1x32xf32>
      %cst_105 = arith.constant 5.000000e-03 : f32
      %201 = vector.broadcast %cst_105 : f32 to vector<1x32xf32>
      %202 = arith.mulf %200, %201 : vector<1x32xf32>
      %203 = arith.mulf %199, %199 : vector<1x32xf32>
      %204 = arith.subf %202, %203 : vector<1x32xf32>
      %cst_106 = arith.constant 0.000000e+00 : f32
      %205 = vector.broadcast %cst_106 : f32 to vector<1x32xf32>
      %206 = arith.maximumf %204, %205 : vector<1x32xf32>
      %c0_107 = arith.constant 0 : index
      %c0_108 = arith.constant 0 : index
      %207 = vector.load %arg5[%c0_107, %c0_108] : memref<1x32xf32, #tpu.memory_space<vmem>>, vector<1x32xf32>
      %cst_109 = arith.constant 1.000000e-03 : f32
      %208 = vector.broadcast %cst_109 : f32 to vector<1x32xf32>
      %209 = arith.addf %206, %208 : vector<1x32xf32>
      %210 = math.rsqrt %209 : vector<1x32xf32>
      %211 = arith.mulf %207, %210 : vector<1x32xf32>
      %c0_110 = arith.constant 0 : index
      %c0_111 = arith.constant 0 : index
      %212 = vector.load %arg6[%c0_110, %c0_111] : memref<1x32xf32, #tpu.memory_space<vmem>>, vector<1x32xf32>
      %213 = arith.mulf %199, %211 : vector<1x32xf32>
      %214 = arith.subf %212, %213 : vector<1x32xf32>
      %c0_112 = arith.constant 0 : index
      %c0_113 = arith.constant 0 : index
      %215 = vector.load %arg7[%c0_112, %c0_113] : memref<1x32xf32, #tpu.memory_space<vmem>>, vector<1x32xf32>
      tpu.vector_store %arg7[%c0_112, %c0_113], %211 {strides = array<i32>} : memref<1x32xf32, #tpu.memory_space<vmem>>, vector<1x32xf32>,
      %c0_114 = arith.constant 0 : index
      %c0_115 = arith.constant 0 : index
      %216 = vector.load %arg8[%c0_114, %c0_115] : memref<1x32xf32, #tpu.memory_space<vmem>>, vector<1x32xf32>
      tpu.vector_store %arg8[%c0_114, %c0_115], %214 {strides = array<i32>} : memref<1x32xf32, #tpu.memory_space<vmem>>, vector<1x32xf32>,
      %c0_116 = arith.constant 0 : index
      %c0_117 = arith.constant 0 : index
      %217 = vector.load %arg12[%c0_116, %c0_117] : memref<16x32xf32, #tpu.memory_space<vmem>>, vector<16x32xf32>
      %cst_118 = arith.constant -1.500000e+38 : f32
      %218 = vector.broadcast %cst_118 : f32 to vector<16x32xf32>
      %219 = arith.cmpf ogt, %217, %218 : vector<16x32xf32>
      %220 = vector.broadcast %211 : vector<1x32xf32> to vector<16x32xf32>
      %221 = arith.mulf %217, %220 : vector<16x32xf32>
      %222 = vector.broadcast %214 : vector<1x32xf32> to vector<16x32xf32>
      %223 = arith.addf %221, %222 : vector<16x32xf32>
      %cst_119 = arith.constant 0.000000e+00 : f32
      %224 = vector.broadcast %cst_119 : f32 to vector<16x32xf32>
      %225 = arith.maximumf %223, %224 : vector<16x32xf32>
      %cst_120 = arith.constant 0.000000e+00 : f32
      %226 = vector.broadcast %cst_120 : f32 to vector<16x32xf32>
      %227 = arith.select %219, %225, %226 : vector<16x32xi1>, vector<16x32xf32>
      %c0_121 = arith.constant 0 : index
      %c0_122 = arith.constant 0 : index
      %228 = vector.load %arg9[%c0_121, %c0_122] : memref<16x32xf32, #tpu.memory_space<vmem>>, vector<16x32xf32>
      tpu.vector_store %arg9[%c0_121, %c0_122], %227 {strides = array<i32>} : memref<16x32xf32, #tpu.memory_space<vmem>>, vector<16x32xf32>,
    } else {
    }
    return
  }
  func.func @transform_0(%arg0: i32, %arg1: memref<256xi32, #tpu.memory_space<smem>>) -> (i32, i32) {
    %c0_i32 = arith.constant 0 : i32
    %c0_i32_0 = arith.constant 0 : i32
    return %arg0, %c0_i32 : i32, i32
  }
  func.func @transform_1(%arg0: i32, %arg1: memref<256xi32, #tpu.memory_space<smem>>) -> (i32, i32) {
    %c0_i32 = arith.constant 0 : i32
    %c0_i32_0 = arith.constant 0 : i32
    return %arg0, %c0_i32 : i32, i32
  }
  func.func @transform_2(%arg0: i32, %arg1: memref<256xi32, #tpu.memory_space<smem>>) -> (i32, i32) {
    %c0_i32 = arith.constant 0 : i32
    %c0_i32_0 = arith.constant 0 : i32
    %c0_i32_1 = arith.constant 0 : i32
    return %c0_i32, %c0_i32_0 : i32, i32
  }
  func.func @transform_3(%arg0: i32, %arg1: memref<256xi32, #tpu.memory_space<smem>>) -> (i32, i32) {
    %c0_i32 = arith.constant 0 : i32
    %c0_i32_0 = arith.constant 0 : i32
    %c0_i32_1 = arith.constant 0 : i32
    return %c0_i32, %c0_i32_0 : i32, i32
  }
  func.func @transform_4(%arg0: i32, %arg1: memref<256xi32, #tpu.memory_space<smem>>) -> (i32, i32) {
    %c0_i32 = arith.constant 0 : i32
    %c0_i32_0 = arith.constant 0 : i32
    %c0_i32_1 = arith.constant 0 : i32
    return %c0_i32, %c0_i32_0 : i32, i32
  }
  func.func @transform_5(%arg0: i32, %arg1: memref<256xi32, #tpu.memory_space<smem>>) -> (i32, i32) {
    %c0_i32 = arith.constant 0 : i32
    %c0_i32_0 = arith.constant 0 : i32
    %c0_i32_1 = arith.constant 0 : i32
    return %c0_i32, %c0_i32_0 : i32, i32
  }
  func.func @transform_6(%arg0: i32, %arg1: memref<256xi32, #tpu.memory_space<smem>>) -> (i32, i32) {
    %c0_i32 = arith.constant 0 : i32
    %c0_i32_0 = arith.constant 0 : i32
    %c0_i32_1 = arith.constant 0 : i32
    return %c0_i32, %c0_i32_0 : i32, i32
  }
  func.func @transform_7(%arg0: i32, %arg1: memref<256xi32, #tpu.memory_space<smem>>) -> (i32, i32) {
    %c0_i32 = arith.constant 0 : i32
    %c0_i32_0 = arith.constant 0 : i32
    %c0_i32_1 = arith.constant 0 : i32
    return %c0_i32, %c0_i32_0 : i32, i32
  }
}

</mosaic_0001>

<llo_original>
// kernel: tpu_custom_call.1
$region0: #{tpu_custom_call.1}
  #allocation0 [shape = 'u32[]', space=smem, size = 0x4, offset = 0x4, fixed_abs, tag = 'smem constant byte address 0x4 - core index']
  #allocation1 [shape = 'u32[144,128]{1,0:T(1,128)}', space=vmem, size = 0x12000, scoped, tag = 'internal scratch']
  #allocation2 [shape = 'f32[1,32]{1,0:T(1,128)}', space=vmem, size = 0x200, scoped, tag = 'scratch operand']
  #allocation3 [shape = 'f32[1,32]{1,0:T(1,128)}', space=vmem, size = 0x200, scoped, tag = 'scratch operand']
  #allocation4 [shape = 'f32[16,32]{1,0:T(8,128)}', space=vmem, size = 0x2000, scoped, tag = 'scratch operand']
  #allocation5 [shape = 'f32[64,32]{1,0:T(8,128)}', space=vmem, size = 0x8000, scoped, tag = 'scratch operand']
  #allocation6 [shape = 's32[1]{0}', space=sflag, size = 0x4, scoped, tag = 'scoped memory for tpu_custom_call.1']
  #allocation7 [shape = 'u8[1024]{0}', space=smem, size = 0x400, scoped, tag = 'prefetched SMEM operand 0']
  %s0 = inlined_call_operand.vmem [shape: s32[256], index: 0, kind: input, shape index: {}]
  %s1 = inlined_call_operand.vmem [shape: s32[256,1], index: 1, kind: input, shape index: {}]
  %s2 = inlined_call_operand.vmem [shape: bf16[256,16], index: 2, kind: input, shape index: {}]
  %s3 = inlined_call_operand.vmem [shape: bf16[16,32], index: 3, kind: input, shape index: {}]
  %s4 = inlined_call_operand.vmem [shape: f32[1,32], index: 4, kind: input, shape index: {}]
  %s5 = inlined_call_operand.vmem [shape: f32[1,32], index: 5, kind: input, shape index: {}]
  %s6 = inlined_call_operand.hbm [shape: f32[1,32], index: 6, kind: output, shape index: {0}]
  %s7 = inlined_call_operand.hbm [shape: f32[1,32], index: 7, kind: output, shape index: {1}]
  %s8 = inlined_call_operand.hbm [shape: f32[16,32], index: 8, kind: output, shape index: {2}]
  %9 = xla_tuple %s6, %s7, %s8
  %s10 = sld [smem:[#allocation0]]
  $region77: #{tpu_custom_call.1} parent=0
    _
  %s12 = ssub.s32 1, %s10
  %s13 = scalar_select 0, %s12, %s10
  %s14 = sshll.u32 %s0, 4
  %s15 = int_to_ptr.vmem [resolvable:$true] %s14
  %17 = dma.vmem_to_smem %s15, 32, [#allocation7], [#allocation6]
  %18 = dma.done [#allocation6], 32
  %19 = sfence
  $region1: #{tpu_custom_call.1} parent=0
    #allocation8 [shape = 'u8[512]{0}', space=vmem, size = 0x400, scoped, tag = 'output window, operand 0, single buffered']
    #allocation9 [shape = 's32[2]{0}', space=sflag, size = 0x8, scoped, tag = 'scoped memory for tpu_custom_call.1']
    #allocation10 [shape = 'u8[512]{0}', space=vmem, size = 0x400, scoped, tag = 'output window, operand 1, single buffered']
    #allocation11 [shape = 's32[1]{0}', space=sflag, size = 0x4, scoped, tag = 'scoped memory for tpu_custom_call.1']
    #allocation12 [shape = 'u8[8192]{0}', space=vmem, size = 0x2000, scoped, tag = 'output window, operand 2, single buffered']
    %20 = vsyncpa [#allocation9], 0
    %21 = vsyncpa [#allocation11], 0
    loop: start=0, step=1, limit=6
    $region2: #{tpu_custom_call.1} parent=1 // loop_pre_header
      _
    $region3: #{tpu_custom_call.1} parent=1 // loop_header
      %s23 = sphi 0, %s27
      %p24 = scmp.ge.s32.totalorder %s23, 6
      %s33 = sphi 0, %s35
      %s36 = sphi 0, %s33
      %s37 = sphi 0, %s36
      %s53 = sphi 0, %s37
      %s59 = sphi 0, %s61
      %s62 = sphi 0, %s59
      %s63 = sphi 0, %s62
      %s79 = sphi 0, %s63
      %s83 = sphi 0, %s83
      %s85 = sphi 0, %s83
      %s86 = sphi 0, %s85
      %s100 = sphi 0, %s86
      %s104 = sphi 0, %s104
      %s106 = sphi 0, %s104
      %s107 = sphi 0, %s106
      %s121 = sphi 0, %s107
      %s125 = sphi 0, %s125
      %s127 = sphi 0, %s125
      %s128 = sphi 0, %s127
      %s142 = sphi 0, %s128
      %s146 = sphi 0, %s146
      %s148 = sphi 0, %s146
      %s149 = sphi 0, %s148
      %s163 = sphi 0, %s149
      %s167 = sphi 0, %s167
      %s169 = sphi 0, %s167
      %s170 = sphi 0, %s169
      %s184 = sphi 0, %s170
      %s188 = sphi 0, %s188
      %s190 = sphi 0, %s188
      %s191 = sphi 0, %s190
      %s205 = sphi 0, %s191
    $region4: #{tpu_custom_call.1} parent=1 // loop_header_branch
      %26 = sbr.rel (%p24) target = $region8
    $region5: #{tpu_custom_call.1} parent=1 // loop_body
      %s28 = ssub.s32 %s23, 1
      %s29 = ssub.s32 %s23, 2
      %s30 = sadd.s32 %s23, 1
      %s31 = ssub.s32 %s23, %s30
      %p32 = scmp.eq.s32.totalorder %s31, 0
      %s34 = sadd.s32 %s33, 1
      %s35 = scalar_select %p32, %s33, %s34
      %p38 = pneg %p32
      %p39 = scmp.eq.s32.totalorder %s23, 3
      %p40 = por %p38, %p39
      %p41 = scmp.ne.s32.totalorder %s33, %s36
      %p42 = scmp.eq.s32.totalorder %s23, 0
      %p43 = por %p41, %p42
      %p44 = scmp.ne.s32.totalorder %s33, %s36
      %p45 = scmp.eq.s32.totalorder %s28, 3
      %p46 = por %p44, %p45
      %p47 = scmp.ne.s32.totalorder %s36, %s37
      %p48 = scmp.eq.s32.totalorder %s28, 0
      %p49 = por %p47, %p48
      %p50 = scmp.ne.s32.totalorder %s36, %s37
      %p51 = scmp.eq.s32.totalorder %s29, 3
      %p52 = por %p50, %p51
      %p54 = scmp.ne.s32.totalorder %s37, %s53
      %p55 = scmp.eq.s32.totalorder %s29, 0
      %p56 = por %p54, %p55
      %s57 = ssub.s32 %s23, %s30
      %p58 = scmp.eq.s32.totalorder %s57, 0
      %s60 = sadd.s32 %s59, 1
      %s61 = scalar_select %p58, %s59, %s60
      %p64 = pneg %p58
      %p65 = scmp.eq.s32.totalorder %s23, 3
      %p66 = por %p64, %p65
      %p67 = scmp.ne.s32.totalorder %s59, %s62
      %p68 = scmp.eq.s32.totalorder %s23, 0
      %p69 = por %p67, %p68
      %p70 = scmp.ne.s32.totalorder %s59, %s62
      %p71 = scmp.eq.s32.totalorder %s28, 3
      %p72 = por %p70, %p71
      %p73 = scmp.ne.s32.totalorder %s62, %s63
      %p74 = scmp.eq.s32.totalorder %s28, 0
      %p75 = por %p73, %p74
      %p76 = scmp.ne.s32.totalorder %s62, %s63
      %p77 = scmp.eq.s32.totalorder %s29, 3
      %p78 = por %p76, %p77
      %p80 = scmp.ne.s32.totalorder %s63, %s79
      %p81 = scmp.eq.s32.totalorder %s29, 0
      %p82 = por %p80, %p81
      %s84 = sadd.s32 %s83, 1
      %p87 = scmp.eq.s32.totalorder %s23, 3
      %p88 = scmp.ne.s32.totalorder %s83, %s85
      %p89 = scmp.eq.s32.totalorder %s23, 0
      %p90 = por %p88, %p89
      %p91 = scmp.ne.s32.totalorder %s83, %s85
      %p92 = scmp.eq.s32.totalorder %s28, 3
      %p93 = por %p91, %p92
      %p94 = scmp.ne.s32.totalorder %s85, %s86
      %p95 = scmp.eq.s32.totalorder %s28, 0
      %p96 = por %p94, %p95
      %p97 = scmp.ne.s32.totalorder %s85, %s86
      %p98 = scmp.eq.s32.totalorder %s29, 3
      %p99 = por %p97, %p98
      %p101 = scmp.ne.s32.totalorder %s86, %s100
      %p102 = scmp.eq.s32.totalorder %s29, 0
      %p103 = por %p101, %p102
      %s105 = sadd.s32 %s104, 1
      %p108 = scmp.eq.s32.totalorder %s23, 3
      %p109 = scmp.ne.s32.totalorder %s104, %s106
      %p110 = scmp.eq.s32.totalorder %s23, 0
      %p111 = por %p109, %p110
      %p112 = scmp.ne.s32.totalorder %s104, %s106
      %p113 = scmp.eq.s32.totalorder %s28, 3
      %p114 = por %p112, %p113
      %p115 = scmp.ne.s32.totalorder %s106, %s107
      %p116 = scmp.eq.s32.totalorder %s28, 0
      %p117 = por %p115, %p116
      %p118 = scmp.ne.s32.totalorder %s106, %s107
      %p119 = scmp.eq.s32.totalorder %s29, 3
      %p120 = por %p118, %p119
      %p122 = scmp.ne.s32.totalorder %s107, %s121
      %p123 = scmp.eq.s32.totalorder %s29, 0
      %p124 = por %p122, %p123
      %s126 = sadd.s32 %s125, 1
      %p129 = scmp.eq.s32.totalorder %s23, 3
      %p130 = scmp.ne.s32.totalorder %s125, %s127
      %p131 = scmp.eq.s32.totalorder %s23, 0
      %p132 = por %p130, %p131
      %p133 = scmp.ne.s32.totalorder %s125, %s127
      %p134 = scmp.eq.s32.totalorder %s28, 3
      %p135 = por %p133, %p134
      %p136 = scmp.ne.s32.totalorder %s127, %s128
      %p137 = scmp.eq.s32.totalorder %s28, 0
      %p138 = por %p136, %p137
      %p139 = scmp.ne.s32.totalorder %s127, %s128
      %p140 = scmp.eq.s32.totalorder %s29, 3
      %p141 = por %p139, %p140
      %p143 = scmp.ne.s32.totalorder %s128, %s142
      %p144 = scmp.eq.s32.totalorder %s29, 0
      %p145 = por %p143, %p144
      %s147 = sadd.s32 %s146, 1
      %p150 = scmp.eq.s32.totalorder %s23, 3
      %p151 = scmp.ne.s32.totalorder %s146, %s148
      %p152 = scmp.eq.s32.totalorder %s23, 0
      %p153 = por %p151, %p152
      %p154 = scmp.ne.s32.totalorder %s146, %s148
      %p155 = scmp.eq.s32.totalorder %s28, 3
      %p156 = por %p154, %p155
      %p157 = scmp.ne.s32.totalorder %s148, %s149
      %p158 = scmp.eq.s32.totalorder %s28, 0
      %p159 = por %p157, %p158
      %p160 = scmp.ne.s32.totalorder %s148, %s149
      %p161 = scmp.eq.s32.totalorder %s29, 3
      %p162 = por %p160, %p161
      %p164 = scmp.ne.s32.totalorder %s149, %s163
      %p165 = scmp.eq.s32.totalorder %s29, 0
      %p166 = por %p164, %p165
      %s168 = sadd.s32 %s167, 1
      %p171 = scmp.eq.s32.totalorder %s23, 3
      %p172 = scmp.ne.s32.totalorder %s167, %s169
      %p173 = scmp.eq.s32.totalorder %s23, 0
      %p174 = por %p172, %p173
      %p175 = scmp.ne.s32.totalorder %s167, %s169
      %p176 = scmp.eq.s32.totalorder %s28, 3
      %p177 = por %p175, %p176
      %p178 = scmp.ne.s32.totalorder %s169, %s170
      %p179 = scmp.eq.s32.totalorder %s28, 0
      %p180 = por %p178, %p179
      %p181 = scmp.ne.s32.totalorder %s169, %s170
      %p182 = scmp.eq.s32.totalorder %s29, 3
      %p183 = por %p181, %p182
      %p185 = scmp.ne.s32.totalorder %s170, %s184
      %p186 = scmp.eq.s32.totalorder %s29, 0
      %p187 = por %p185, %p186
      %s189 = sadd.s32 %s188, 1
      %p192 = scmp.eq.s32.totalorder %s23, 3
      %p193 = scmp.ne.s32.totalorder %s188, %s190
      %p194 = scmp.eq.s32.totalorder %s23, 0
      %p195 = por %p193, %p194
      %p196 = scmp.ne.s32.totalorder %s188, %s190
      %p197 = scmp.eq.s32.totalorder %s28, 3
      %p198 = por %p196, %p197
      %p199 = scmp.ne.s32.totalorder %s190, %s191
      %p200 = scmp.eq.s32.totalorder %s28, 0
      %p201 = por %p199, %p200
      %p202 = scmp.ne.s32.totalorder %s190, %s191
      %p203 = scmp.eq.s32.totalorder %s29, 3
      %p204 = por %p202, %p203
      %p206 = scmp.ne.s32.totalorder %s191, %s205
      %p207 = scmp.eq.s32.totalorder %s29, 0
      %p208 = por %p206, %p207
      %p209 = scmp.le.s32.totalorder 1, %s23
      %p210 = scmp.lt.s32.totalorder %s23, 5
      %p211 = pnand %p209, %p210
      %p212 = pneg %p211
      // Predicated region
      $region9: #{tpu_custom_call.1} parent=5 // pred_check
        _
      $region10: #{tpu_custom_call.1} parent=5 // pred_check_branch
        %214 = sbr.rel (%p211) target = $region12
      $region11: #{tpu_custom_call.1} parent=5 // pred_region
        %s215 = ssub.s32 %s23, 1
        // Predicated region
        $region13: #{tpu_custom_call.1} parent=11 // pred_check
          %p216 = pneg %p96
        $region14: #{tpu_custom_call.1} parent=11 // pred_check_branch
          %218 = sbr.rel (%p216) target = $region16
        $region15: #{tpu_custom_call.1} parent=11 // pred_region
          _
        $region16: #{tpu_custom_call.1} parent=11 // pred_fallthru
          _
        // Predicated region
        $region17: #{tpu_custom_call.1} parent=11 // pred_check
          %p219 = pneg %p117
        $region18: #{tpu_custom_call.1} parent=11 // pred_check_branch
          %221 = sbr.rel (%p219) target = $region20
        $region19: #{tpu_custom_call.1} parent=11 // pred_region
          _
        $region20: #{tpu_custom_call.1} parent=11 // pred_fallthru
          _
        // Predicated region
        $region21: #{tpu_custom_call.1} parent=11 // pred_check
          %p222 = pneg %p138
        $region22: #{tpu_custom_call.1} parent=11 // pred_check_branch
          %224 = sbr.rel (%p222) target = $region24
        $region23: #{tpu_custom_call.1} parent=11 // pred_region
          _
        $region24: #{tpu_custom_call.1} parent=11 // pred_fallthru
          _
      $region12: #{tpu_custom_call.1} parent=5 // pred_fallthru
        _
      %p225 = scmp.lt.s32.totalorder %s23, 4
      // Predicated region
      $region25: #{tpu_custom_call.1} parent=5 // pred_check
        %p226 = pneg %p225
      $region26: #{tpu_custom_call.1} parent=5 // pred_check_branch
        %228 = sbr.rel (%p226) target = $region28
      $region27: #{tpu_custom_call.1} parent=5 // pred_region
        // Predicated region
        $region29: #{tpu_custom_call.1} parent=27 // pred_check
          %p229 = pneg %p43
        $region30: #{tpu_custom_call.1} parent=27 // pred_check_branch
          %231 = sbr.rel (%p229) target = $region32
        $region31: #{tpu_custom_call.1} parent=27 // pred_region
          %s232 = smul.u32 8, %s23
          %p233 = scmp.lt.s32.totalorder %s232, 31
          %s234 = scalar_select %p233, %s232, 31
          %s235 = smul.addr %s234, 8
          %s236 = scalar_lea.vmem %s1, %s235
          %s237 = smul.u32 8, %s23
        $region32: #{tpu_custom_call.1} parent=27 // pred_fallthru
          _
        // Predicated region
        $region33: #{tpu_custom_call.1} parent=27 // pred_check
          %p238 = pneg %p69
        $region34: #{tpu_custom_call.1} parent=27 // pred_check_branch
          %240 = sbr.rel (%p238) target = $region36
        $region35: #{tpu_custom_call.1} parent=27 // pred_region
          %s241 = smul.u32 8, %s23
          %p242 = scmp.lt.s32.totalorder %s241, 31
          %s243 = scalar_select %p242, %s241, 31
          %s244 = smul.addr %s243, 4
          %s245 = scalar_lea.vmem %s2, %s244
          %s246 = smul.u32 8, %s23
        $region36: #{tpu_custom_call.1} parent=27 // pred_fallthru
          _
      $region28: #{tpu_custom_call.1} parent=5 // pred_fallthru
        _
      %p247 = scmp.le.s32.totalorder 1, %s23
      %p248 = scmp.lt.s32.totalorder %s23, 5
      %p249 = pnand %p247, %p248
      %p250 = pneg %p249
      // Predicated region
      $region37: #{tpu_custom_call.1} parent=5 // pred_check
        _
      $region38: #{tpu_custom_call.1} parent=5 // pred_check_branch
        %252 = sbr.rel (%p249) target = $region40
      $region39: #{tpu_custom_call.1} parent=5 // pred_region
        %s253 = ssub.s32 %s23, 1
        %s254 = smul.u32 8, %s28
        %p255 = scmp.lt.s32.totalorder %s254, 31
        %s256 = scalar_select %p255, %s254, 31
        %s257 = smul.addr %s256, 8
        %s258 = scalar_lea.vmem %s1, %s257
        %p259 = pneg %p49
        %p260 = pneg %p46
        %s261 = smul.u32 8, %s28
        %p262 = scmp.lt.s32.totalorder %s261, 31
        %s263 = scalar_select %p262, %s261, 31
        %s264 = smul.addr %s263, 4
        %s265 = scalar_lea.vmem %s2, %s264
        %p266 = pneg %p75
        %p267 = pneg %p72
        %p268 = pneg %p96
        %p269 = pneg %p93
        %p270 = pneg %p117
        %p271 = pneg %p114
        %p272 = pneg %p138
        %p273 = pneg %p135
        %p274 = pneg %p159
        %p275 = pneg %p156
        %p276 = pneg %p180
        %p277 = pneg %p177
        %p278 = pneg %p201
        %p279 = pneg %p198
        %s280 = smul.u32 8, %s28
        %p281 = scmp.lt.s32.totalorder %s280, 31
        %s282 = scalar_select %p281, %s280, 31
        %s283 = smul.addr %s282, 8
        %s284 = scalar_lea.vmem %s1, %s283
        %s285 = smul.u32 8, %s28
        %s286 = smul.u32 8, %s28
        %p287 = scmp.lt.s32.totalorder %s286, 31
        %s288 = scalar_select %p287, %s286, 31
        %s289 = smul.addr %s288, 4
        %s290 = scalar_lea.vmem %s2, %s289
        %s291 = smul.u32 8, %s28
        %p293 = scmp.eq.s32.totalorder %s28, 0
        // Predicated region
        $region41: #{tpu_custom_call.1} parent=39 // pred_check
          %p294 = pneg %p293
        $region42: #{tpu_custom_call.1} parent=39 // pred_check_branch
          %296 = sbr.rel (%p294) target = $region44
        $region43: #{tpu_custom_call.1} parent=39 // pred_region
          %vm297 = vcmask 253952
          %298 = vst.msk [vmem:[#allocation2] sm:$0x1] %vm297, 0.0
          %299 = vst.msk [vmem:[#allocation3] sm:$0x1] %vm297, 0.0
          %vm300 = vcmask 261120
          %301 = vst.msk [vmem:[#allocation4] sm:$0xff] %vm300, -3e+38
          %302 = vst.msk [vmem:[#allocation4 + $0x8] sm:$0xff] %vm300, -3e+38
        $region44: #{tpu_custom_call.1} parent=39 // pred_fallthru
          _
        %v303 = vld [vmem:[%s290] sm:$0xf]
        %v304 = vld [vmem:[%s290 + $0x4] sm:$0xf]
        %v305 = vld [vmem:[%s290 + $0x8] sm:$0xf]
        %v306 = vld [vmem:[%s290 + $0xc] sm:$0xf]
        %v307 = vld [vmem:[%s290 + $0x10] sm:$0xf]
        %v308 = vld [vmem:[%s290 + $0x14] sm:$0xf]
        %v309 = vld [vmem:[%s290 + $0x18] sm:$0xf]
        %v310 = vld [vmem:[%s290 + $0x1c] sm:$0xf]
        %v311 = vld [vmem:[%s3] sm:$0xf]
        %v312 = vld [vmem:[%s3 + $0x4] sm:$0xf]
        %v321 = vunpack.c.l.b16 %v303
        %v322 = vunpack.c.l.b16 %v304
        %v323 = vunpack.c.l.b16 %v305
        %v324 = vunpack.c.l.b16 %v306
        %v325 = vunpack.c.l.b16 %v307
        %v326 = vunpack.c.l.b16 %v308
        %v327 = vunpack.c.l.b16 %v309
        %v328 = vunpack.c.l.b16 %v310
        %v329 = vpack.c.b16 %v322, %v321
        %v330 = vpack.c.b16 %v324, %v323
        %v331 = vpack.c.b16 %v326, %v325
        %v332 = vpack.c.b16 %v328, %v327
        %v335 = vunpack.c.l.b16 %v311
        %v336 = vunpack.c.l.b16 %v312
        %v337 = vpack.c.b16 %v336, %v335
        %vm339 = vcmask 130048
        %v341 = vsel %vm339, %v329, 0
        %v344 = vsel %vm339, %v330, 0
        %v347 = vsel %vm339, %v331, 0
        %v350 = vsel %vm339, %v332, 0
        %352 = vmatprep.subr.bf16.mxu0 0
        %353 = vmatpush1.bf16.msra.mxu0 %v337
        %354 = vmatprep.subr.bf16.mxu0 0
        %355 = vmatpush1.bf16.msra.mxu0 0
        %356 = vmatprep.subr.bf16.mxu0 0
        %357 = vmatpush1.bf16.msra.mxu0 0
        %358 = vmatprep.subr.bf16.mxu0 0
        %359 = vmatpush1.bf16.msra.mxu0 0
        %360 = vmatprep.subr.bf16.mxu0 0
        %361 = vmatpush1.bf16.msra.mxu0 0
        %362 = vmatprep.subr.bf16.mxu0 0
        %363 = vmatpush1.bf16.msra.mxu0 0
        %364 = vmatprep.subr.bf16.mxu0 0
        %365 = vmatpush1.bf16.msra.mxu0 0
        %366 = vmatprep.subr.bf16.mxu0 0
        %367 = vmatpush1.bf16.msra.mxu0 0
        %368 = vmatprep.subr.bf16.mxu0 0
        %369 = vmatpush1.bf16.msra.mxu0 0
        %370 = vmatprep.subr.bf16.mxu0 0
        %371 = vmatpush1.bf16.msra.mxu0 0
        %372 = vmatprep.subr.bf16.mxu0 0
        %373 = vmatpush1.bf16.msra.mxu0 0
        %374 = vmatprep.subr.bf16.mxu0 0
        %375 = vmatpush1.bf16.msra.mxu0 0
        %376 = vmatprep.subr.bf16.mxu0 0
        %377 = vmatpush1.bf16.msra.mxu0 0
        %378 = vmatprep.subr.bf16.mxu0 0
        %379 = vmatpush1.bf16.msra.mxu0 0
        %380 = vmatprep.subr.bf16.mxu0 0
        %381 = vmatpush1.bf16.msra.mxu0 0
        %382 = vmatprep.subr.bf16.mxu0 0
        %383 = vmatpush1.bf16.msra.mxu0 0
        %384 = vmatprep.mubr.bf16.mxu0 0
        %385 = vmatmul.mubr.bf16.gmra.mrb[0].mxu0 %v341
        %v386 = vpop.f32.mrb[0].mxu0
        %v387 = vadd.f32 0.0, %v386
        %v388 = vpop.f32.mrb[0].mxu0
        %v389 = vpop.f32.mrb[0].mxu0
        %v390 = vadd.f32 0.0, %v389
        %v391 = vpop.f32.mrb[0].mxu0
        %392 = vmatprep.mubr.bf16.mxu0 0
        %393 = vmatmul.mubr.bf16.gmra.mrb[0].mxu0 %v344
        %v394 = vpop.f32.mrb[0].mxu0
        %v395 = vadd.f32 0.0, %v394
        %v396 = vpop.f32.mrb[0].mxu0
        %v397 = vpop.f32.mrb[0].mxu0
        %v398 = vadd.f32 0.0, %v397
        %v399 = vpop.f32.mrb[0].mxu0
        %400 = vmatprep.mubr.bf16.mxu0 0
        %401 = vmatmul.mubr.bf16.gmra.mrb[0].mxu0 %v347
        %v402 = vpop.f32.mrb[0].mxu0
        %v403 = vadd.f32 0.0, %v402
        %v404 = vpop.f32.mrb[0].mxu0
        %v405 = vpop.f32.mrb[0].mxu0
        %v406 = vadd.f32 0.0, %v405
        %v407 = vpop.f32.mrb[0].mxu0
        %408 = vmatprep.mubr.bf16.mxu0 0
        %409 = vmatmul.mubr.bf16.gmra.mrb[0].mxu0 %v350
        %v410 = vpop.f32.mrb[0].mxu0
        %v411 = vadd.f32 0.0, %v410
        %v412 = vpop.f32.mrb[0].mxu0
        %v413 = vpop.f32.mrb[0].mxu0
        %v414 = vadd.f32 0.0, %v413
        %v415 = vpop.f32.mrb[0].mxu0
        %416 = vdwg.mxu0
        %v417 = vld [vmem:[#allocation2] sm:$0x1]
        %vm418 = vcmask 261120
        %v419 = vsel %vm418, %v387, 0.0
        %v420 = vsel %vm418, %v390, 0.0
        %v421 = vadd.f32 %v419, %v420
        %v422 = vsel %vm418, %v395, 0.0
        %v423 = vadd.f32 %v421, %v422
        %v424 = vsel %vm418, %v398, 0.0
        %v425 = vadd.f32 %v423, %v424
        %v426 = vsel %vm418, %v403, 0.0
        %v427 = vadd.f32 %v425, %v426
        %v428 = vsel %vm418, %v406, 0.0
        %v429 = vadd.f32 %v427, %v428
        %v430 = vsel %vm418, %v411, 0.0
        %v431 = vadd.f32 %v429, %v430
        %v432 = vsel %vm418, %v414, 0.0
        %v433 = vadd.f32 %v431, %v432
        %v434 = vrot.slane %v433, 4
        %v435 = vadd.f32 %v433, %v434
        %v436 = vrot.slane %v435, 2
        %v437 = vadd.f32 %v435, %v436
        %v438 = vrot.slane %v437, 1
        %v439 = vadd.f32 %v437, %v438
        %v440 = vadd.f32 %v417, %v439
        %vm441 = vcmask 253952
        %442 = vst.msk [vmem:[#allocation2] sm:$0x1] %vm441, %v440
        %v443 = vld [vmem:[#allocation3] sm:$0x1]
        %v444 = vmul.f32 %v387, %v387
        %v445 = vmul.f32 %v390, %v390
        %v446 = vmul.f32 %v395, %v395
        %v447 = vmul.f32 %v398, %v398
        %v448 = vmul.f32 %v403, %v403
        %v449 = vmul.f32 %v406, %v406
        %v450 = vmul.f32 %v411, %v411
        %v451 = vmul.f32 %v414, %v414
        %v452 = vsel %vm418, %v444, 0.0
        %v453 = vsel %vm418, %v445, 0.0
        %v454 = vadd.f32 %v452, %v453
        %v455 = vsel %vm418, %v446, 0.0
        %v456 = vadd.f32 %v454, %v455
        %v457 = vsel %vm418, %v447, 0.0
        %v458 = vadd.f32 %v456, %v457
        %v459 = vsel %vm418, %v448, 0.0
        %v460 = vadd.f32 %v458, %v459
        %v461 = vsel %vm418, %v449, 0.0
        %v462 = vadd.f32 %v460, %v461
        %v463 = vsel %vm418, %v450, 0.0
        %v464 = vadd.f32 %v462, %v463
        %v465 = vsel %vm418, %v451, 0.0
        %v466 = vadd.f32 %v464, %v465
        %v467 = vrot.slane %v466, 4
        %v468 = vadd.f32 %v466, %v467
        %v469 = vrot.slane %v468, 2
        %v470 = vadd.f32 %v468, %v469
        %v471 = vrot.slane %v470, 1
        %v472 = vadd.f32 %v470, %v471
        %v473 = vadd.f32 %v443, %v472
        %474 = vst.msk [vmem:[#allocation3] sm:$0x1] %vm441, %v473
        %v475 = vld [vmem:[%s284] sm:$0xff]
        %v476 = vld [vmem:[%s284 + $0x8] sm:$0xff]
        %v477 = vld [vmem:[%s284 + $0x10] sm:$0xff]
        %v478 = vld [vmem:[%s284 + $0x18] sm:$0xff]
        %v479 = vld [vmem:[%s284 + $0x20] sm:$0xff]
        %v480 = vld [vmem:[%s284 + $0x28] sm:$0xff]
        %v481 = vld [vmem:[%s284 + $0x30] sm:$0xff]
        %v482 = vld [vmem:[%s284 + $0x38] sm:$0xff]
        %vm483 = vcmp.eq.s32.totalorder %v475, 0
        %vm484 = vcmp.eq.s32.totalorder %v476, 0
        %vm485 = vcmp.eq.s32.totalorder %v477, 0
        %vm486 = vcmp.eq.s32.totalorder %v478, 0
        %vm487 = vcmp.eq.s32.totalorder %v479, 0
        %vm488 = vcmp.eq.s32.totalorder %v480, 0
        %vm489 = vcmp.eq.s32.totalorder %v481, 0
        %vm490 = vcmp.eq.s32.totalorder %v482, 0
        %v491 = vsel %vm483, 1, 0
        %v492 = vsel %vm484, 1, 0
        %v493 = vsel %vm485, 1, 0
        %v494 = vsel %vm486, 1, 0
        %v495 = vsel %vm487, 1, 0
        %v496 = vsel %vm488, 1, 0
        %v497 = vsel %vm489, 1, 0
        %v498 = vsel %vm490, 1, 0
        %499 = vset.pattern.permute.xlu0 0
        %500 = vperm.xlu0 %499, %v491
        %v501 = vpop.permute.xlu0 %500
        %502 = vset.pattern.permute.xlu0 0
        %503 = vperm.xlu0 %502, %v492
        %v504 = vpop.permute.xlu0 %503
        %505 = vset.pattern.permute.xlu0 0
        %506 = vperm.xlu0 %505, %v493
        %v507 = vpop.permute.xlu0 %506
        %508 = vset.pattern.permute.xlu0 0
        %509 = vperm.xlu0 %508, %v494
        %v510 = vpop.permute.xlu0 %509
        %511 = vset.pattern.permute.xlu0 0
        %512 = vperm.xlu0 %511, %v495
        %v513 = vpop.permute.xlu0 %512
        %514 = vset.pattern.permute.xlu0 0
        %515 = vperm.xlu0 %514, %v496
        %v516 = vpop.permute.xlu0 %515
        %517 = vset.pattern.permute.xlu0 0
        %518 = vperm.xlu0 %517, %v497
        %v519 = vpop.permute.xlu0 %518
        %520 = vset.pattern.permute.xlu0 0
        %521 = vperm.xlu0 %520, %v498
        %v522 = vpop.permute.xlu0 %521
        %vm523 = vcmp.eq.s32.totalorder %v501, 1
        %vm524 = vcmp.eq.s32.totalorder %v504, 1
        %vm525 = vcmp.eq.s32.totalorder %v507, 1
        %vm526 = vcmp.eq.s32.totalorder %v510, 1
        %vm527 = vcmp.eq.s32.totalorder %v513, 1
        %vm528 = vcmp.eq.s32.totalorder %v516, 1
        %vm529 = vcmp.eq.s32.totalorder %v519, 1
        %vm530 = vcmp.eq.s32.totalorder %v522, 1
        %v531 = vsel %vm523, %v387, -3e+38
        %v532 = vsel %vm524, %v390, -3e+38
        %v533 = vsel %vm525, %v395, -3e+38
        %v534 = vsel %vm526, %v398, -3e+38
        %v535 = vsel %vm527, %v403, -3e+38
        %v536 = vsel %vm528, %v406, -3e+38
        %v537 = vsel %vm529, %v411, -3e+38
        %v538 = vsel %vm530, %v414, -3e+38
        %v539 = vsel %vm418, %v531, -inf
        %v540 = vsel %vm418, %v532, -inf
        %v541 = vsel %vm418, %v533, -inf
        %v542 = vsel %vm418, %v534, -inf
        %v543 = vsel %vm418, %v535, -inf
        %v544 = vmax.f32 %v539, %v543
        %v545 = vsel %vm418, %v536, -inf
        %v546 = vmax.f32 %v540, %v545
        %v547 = vsel %vm418, %v537, -inf
        %v548 = vmax.f32 %v541, %v547
        %v549 = vsel %vm418, %v538, -inf
        %v550 = vmax.f32 %v542, %v549
        %v551 = vmax.f32 %v544, %v546
        %v552 = vmax.f32 %v548, %v550
        %v553 = vmax.f32 %v551, %v552
        %v554 = vrot.slane %v553, 4
        %v555 = vmax.f32 %v553, %v554
        %v556 = vrot.slane %v555, 2
        %v557 = vmax.f32 %v555, %v556
        %v558 = vrot.slane %v557, 1
        %v559 = vmax.f32 %v557, %v558
        %v560 = vld [vmem:[#allocation4] sm:$0x1]
        %v561 = vmax.f32 %v560, %v559
        %562 = vst.msk [vmem:[#allocation4] sm:$0x1] %vm441, %v561
        %vm563 = vcmp.eq.s32.totalorder %v475, 1
        %vm564 = vcmp.eq.s32.totalorder %v476, 1
        %vm565 = vcmp.eq.s32.totalorder %v477, 1
        %vm566 = vcmp.eq.s32.totalorder %v478, 1
        %vm567 = vcmp.eq.s32.totalorder %v479, 1
        %vm568 = vcmp.eq.s32.totalorder %v480, 1
        %vm569 = vcmp.eq.s32.totalorder %v481, 1
        %vm570 = vcmp.eq.s32.totalorder %v482, 1
        %v571 = vsel %vm563, 1, 0
        %v572 = vsel %vm564, 1, 0
        %v573 = vsel %vm565, 1, 0
        %v574 = vsel %vm566, 1, 0
        %v575 = vsel %vm567, 1, 0
        %v576 = vsel %vm568, 1, 0
        %v577 = vsel %vm569, 1, 0
        %v578 = vsel %vm570, 1, 0
        %579 = vset.pattern.permute.xlu0 0
        %580 = vperm.xlu0 %579, %v571
        %v581 = vpop.permute.xlu0 %580
        %582 = vset.pattern.permute.xlu0 0
        %583 = vperm.xlu0 %582, %v572
        %v584 = vpop.permute.xlu0 %583
        %585 = vset.pattern.permute.xlu0 0
        %586 = vperm.xlu0 %585, %v573
        %v587 = vpop.permute.xlu0 %586
        %588 = vset.pattern.permute.xlu0 0
        %589 = vperm.xlu0 %588, %v574
        %v590 = vpop.permute.xlu0 %589
        %591 = vset.pattern.permute.xlu0 0
        %592 = vperm.xlu0 %591, %v575
        %v593 = vpop.permute.xlu0 %592
        %594 = vset.pattern.permute.xlu0 0
        %595 = vperm.xlu0 %594, %v576
        %v596 = vpop.permute.xlu0 %595
        %597 = vset.pattern.permute.xlu0 0
        %598 = vperm.xlu0 %597, %v577
        %v599 = vpop.permute.xlu0 %598
        %600 = vset.pattern.permute.xlu0 0
        %601 = vperm.xlu0 %600, %v578
        %v602 = vpop.permute.xlu0 %601
        %vm603 = vcmp.eq.s32.totalorder %v581, 1
        %vm604 = vcmp.eq.s32.totalorder %v584, 1
        %vm605 = vcmp.eq.s32.totalorder %v587, 1
        %vm606 = vcmp.eq.s32.totalorder %v590, 1
        %vm607 = vcmp.eq.s32.totalorder %v593, 1
        %vm608 = vcmp.eq.s32.totalorder %v596, 1
        %vm609 = vcmp.eq.s32.totalorder %v599, 1
        %vm610 = vcmp.eq.s32.totalorder %v602, 1
        %v611 = vsel %vm603, %v387, -3e+38
        %v612 = vsel %vm604, %v390, -3e+38
        %v613 = vsel %vm605, %v395, -3e+38
        %v614 = vsel %vm606, %v398, -3e+38
        %v615 = vsel %vm607, %v403, -3e+38
        %v616 = vsel %vm608, %v406, -3e+38
        %v617 = vsel %vm609, %v411, -3e+38
        %v618 = vsel %vm610, %v414, -3e+38
        %v619 = vsel %vm418, %v611, -inf
        %v620 = vsel %vm418, %v612, -inf
        %v621 = vsel %vm418, %v613, -inf
        %v622 = vsel %vm418, %v614, -inf
        %v623 = vsel %vm418, %v615, -inf
        %v624 = vmax.f32 %v619, %v623
        %v625 = vsel %vm418, %v616, -inf
        %v626 = vmax.f32 %v620, %v625
        %v627 = vsel %vm418, %v617, -inf
        %v628 = vmax.f32 %v621, %v627
        %v629 = vsel %vm418, %v618, -inf
        %v630 = vmax.f32 %v622, %v629
        %v631 = vmax.f32 %v624, %v626
        %v632 = vmax.f32 %v628, %v630
        %v633 = vmax.f32 %v631, %v632
        %v634 = vrot.slane %v633, 4
        %v635 = vmax.f32 %v633, %v634
        %v636 = vrot.slane %v635, 2
        %v637 = vmax.f32 %v635, %v636
        %v638 = vrot.slane %v637, 1
        %v639 = vmax.f32 %v637, %v638
        %v640 = vld [vmem:[#allocation4 + $0x1] sm:$0x1]
        %v641 = vmax.f32 %v640, %v639
        %642 = vst.msk [vmem:[#allocation4 + $0x1] sm:$0x1] %vm441, %v641
        %vm643 = vcmp.eq.s32.totalorder %v475, 2
        %vm644 = vcmp.eq.s32.totalorder %v476, 2
        %vm645 = vcmp.eq.s32.totalorder %v477, 2
        %vm646 = vcmp.eq.s32.totalorder %v478, 2
        %vm647 = vcmp.eq.s32.totalorder %v479, 2
        %vm648 = vcmp.eq.s32.totalorder %v480, 2
        %vm649 = vcmp.eq.s32.totalorder %v481, 2
        %vm650 = vcmp.eq.s32.totalorder %v482, 2
        %v651 = vsel %vm643, 1, 0
        %v652 = vsel %vm644, 1, 0
        %v653 = vsel %vm645, 1, 0
        %v654 = vsel %vm646, 1, 0
        %v655 = vsel %vm647, 1, 0
        %v656 = vsel %vm648, 1, 0
        %v657 = vsel %vm649, 1, 0
        %v658 = vsel %vm650, 1, 0
        %659 = vset.pattern.permute.xlu0 0
        %660 = vperm.xlu0 %659, %v651
        %v661 = vpop.permute.xlu0 %660
        %662 = vset.pattern.permute.xlu0 0
        %663 = vperm.xlu0 %662, %v652
        %v664 = vpop.permute.xlu0 %663
        %665 = vset.pattern.permute.xlu0 0
        %666 = vperm.xlu0 %665, %v653
        %v667 = vpop.permute.xlu0 %666
        %668 = vset.pattern.permute.xlu0 0
        %669 = vperm.xlu0 %668, %v654
        %v670 = vpop.permute.xlu0 %669
        %671 = vset.pattern.permute.xlu0 0
        %672 = vperm.xlu0 %671, %v655
        %v673 = vpop.permute.xlu0 %672
        %674 = vset.pattern.permute.xlu0 0
        %675 = vperm.xlu0 %674, %v656
        %v676 = vpop.permute.xlu0 %675
        %677 = vset.pattern.permute.xlu0 0
        %678 = vperm.xlu0 %677, %v657
        %v679 = vpop.permute.xlu0 %678
        %680 = vset.pattern.permute.xlu0 0
        %681 = vperm.xlu0 %680, %v658
        %v682 = vpop.permute.xlu0 %681
        %vm683 = vcmp.eq.s32.totalorder %v661, 1
        %vm684 = vcmp.eq.s32.totalorder %v664, 1
        %vm685 = vcmp.eq.s32.totalorder %v667, 1
        %vm686 = vcmp.eq.s32.totalorder %v670, 1
        %vm687 = vcmp.eq.s32.totalorder %v673, 1
        %vm688 = vcmp.eq.s32.totalorder %v676, 1
        %vm689 = vcmp.eq.s32.totalorder %v679, 1
        %vm690 = vcmp.eq.s32.totalorder %v682, 1
        %v691 = vsel %vm683, %v387, -3e+38
        %v692 = vsel %vm684, %v390, -3e+38
        %v693 = vsel %vm685, %v395, -3e+38
        %v694 = vsel %vm686, %v398, -3e+38
        %v695 = vsel %vm687, %v403, -3e+38
        %v696 = vsel %vm688, %v406, -3e+38
        %v697 = vsel %vm689, %v411, -3e+38
        %v698 = vsel %vm690, %v414, -3e+38
        %v699 = vsel %vm418, %v691, -inf
        %v700 = vsel %vm418, %v692, -inf
        %v701 = vsel %vm418, %v693, -inf
        %v702 = vsel %vm418, %v694, -inf
        %v703 = vsel %vm418, %v695, -inf
        %v704 = vmax.f32 %v699, %v703
        %v705 = vsel %vm418, %v696, -inf
        %v706 = vmax.f32 %v700, %v705
        %v707 = vsel %vm418, %v697, -inf
        %v708 = vmax.f32 %v701, %v707
        %v709 = vsel %vm418, %v698, -inf
        %v710 = vmax.f32 %v702, %v709
        %v711 = vmax.f32 %v704, %v706
        %v712 = vmax.f32 %v708, %v710
        %v713 = vmax.f32 %v711, %v712
        %v714 = vrot.slane %v713, 4
        %v715 = vmax.f32 %v713, %v714
        %v716 = vrot.slane %v715, 2
        %v717 = vmax.f32 %v715, %v716
        %v718 = vrot.slane %v717, 1
        %v719 = vmax.f32 %v717, %v718
        %v720 = vld [vmem:[#allocation4 + $0x2] sm:$0x1]
        %v721 = vmax.f32 %v720, %v719
        %722 = vst.msk [vmem:[#allocation4 + $0x2] sm:$0x1] %vm441, %v721
        %vm723 = vcmp.eq.s32.totalorder %v475, 3
        %vm724 = vcmp.eq.s32.totalorder %v476, 3
        %vm725 = vcmp.eq.s32.totalorder %v477, 3
        %vm726 = vcmp.eq.s32.totalorder %v478, 3
        %vm727 = vcmp.eq.s32.totalorder %v479, 3
        %vm728 = vcmp.eq.s32.totalorder %v480, 3
        %vm729 = vcmp.eq.s32.totalorder %v481, 3
        %vm730 = vcmp.eq.s32.totalorder %v482, 3
        %v731 = vsel %vm723, 1, 0
        %v732 = vsel %vm724, 1, 0
        %v733 = vsel %vm725, 1, 0
        %v734 = vsel %vm726, 1, 0
        %v735 = vsel %vm727, 1, 0
        %v736 = vsel %vm728, 1, 0
        %v737 = vsel %vm729, 1, 0
        %v738 = vsel %vm730, 1, 0
        %739 = vset.pattern.permute.xlu0 0
        %740 = vperm.xlu0 %739, %v731
        %v741 = vpop.permute.xlu0 %740
        %742 = vset.pattern.permute.xlu0 0
        %743 = vperm.xlu0 %742, %v732
        %v744 = vpop.permute.xlu0 %743
        %745 = vset.pattern.permute.xlu0 0
        %746 = vperm.xlu0 %745, %v733
        %v747 = vpop.permute.xlu0 %746
        %748 = vset.pattern.permute.xlu0 0
        %749 = vperm.xlu0 %748, %v734
        %v750 = vpop.permute.xlu0 %749
        %751 = vset.pattern.permute.xlu0 0
        %752 = vperm.xlu0 %751, %v735
        %v753 = vpop.permute.xlu0 %752
        %754 = vset.pattern.permute.xlu0 0
        %755 = vperm.xlu0 %754, %v736
        %v756 = vpop.permute.xlu0 %755
        %757 = vset.pattern.permute.xlu0 0
        %758 = vperm.xlu0 %757, %v737
        %v759 = vpop.permute.xlu0 %758
        %760 = vset.pattern.permute.xlu0 0
        %761 = vperm.xlu0 %760, %v738
        %v762 = vpop.permute.xlu0 %761
        %vm763 = vcmp.eq.s32.totalorder %v741, 1
        %vm764 = vcmp.eq.s32.totalorder %v744, 1
        %vm765 = vcmp.eq.s32.totalorder %v747, 1
        %vm766 = vcmp.eq.s32.totalorder %v750, 1
        %vm767 = vcmp.eq.s32.totalorder %v753, 1
        %vm768 = vcmp.eq.s32.totalorder %v756, 1
        %vm769 = vcmp.eq.s32.totalorder %v759, 1
        %vm770 = vcmp.eq.s32.totalorder %v762, 1
        %v771 = vsel %vm763, %v387, -3e+38
        %v772 = vsel %vm764, %v390, -3e+38
        %v773 = vsel %vm765, %v395, -3e+38
        %v774 = vsel %vm766, %v398, -3e+38
        %v775 = vsel %vm767, %v403, -3e+38
        %v776 = vsel %vm768, %v406, -3e+38
        %v777 = vsel %vm769, %v411, -3e+38
        %v778 = vsel %vm770, %v414, -3e+38
        %v779 = vsel %vm418, %v771, -inf
        %v780 = vsel %vm418, %v772, -inf
        %v781 = vsel %vm418, %v773, -inf
        %v782 = vsel %vm418, %v774, -inf
        %v783 = vsel %vm418, %v775, -inf
        %v784 = vmax.f32 %v779, %v783
        %v785 = vsel %vm418, %v776, -inf
        %v786 = vmax.f32 %v780, %v785
        %v787 = vsel %vm418, %v777, -inf
        %v788 = vmax.f32 %v781, %v787
        %v789 = vsel %vm418, %v778, -inf
        %v790 = vmax.f32 %v782, %v789
        %v791 = vmax.f32 %v784, %v786
        %v792 = vmax.f32 %v788, %v790
        %v793 = vmax.f32 %v791, %v792
        %v794 = vrot.slane %v793, 4
        %v795 = vmax.f32 %v793, %v794
        %v796 = vrot.slane %v795, 2
        %v797 = vmax.f32 %v795, %v796
        %v798 = vrot.slane %v797, 1
        %v799 = vmax.f32 %v797, %v798
        %v800 = vld [vmem:[#allocation4 + $0x3] sm:$0x1]
        %v801 = vmax.f32 %v800, %v799
        %802 = vst.msk [vmem:[#allocation4 + $0x3] sm:$0x1] %vm441, %v801
        %vm803 = vcmp.eq.s32.totalorder %v475, 4
        %vm804 = vcmp.eq.s32.totalorder %v476, 4
        %vm805 = vcmp.eq.s32.totalorder %v477, 4
        %vm806 = vcmp.eq.s32.totalorder %v478, 4
        %vm807 = vcmp.eq.s32.totalorder %v479, 4
        %vm808 = vcmp.eq.s32.totalorder %v480, 4
        %vm809 = vcmp.eq.s32.totalorder %v481, 4
        %vm810 = vcmp.eq.s32.totalorder %v482, 4
        %v811 = vsel %vm803, 1, 0
        %v812 = vsel %vm804, 1, 0
        %v813 = vsel %vm805, 1, 0
        %v814 = vsel %vm806, 1, 0
        %v815 = vsel %vm807, 1, 0
        %v816 = vsel %vm808, 1, 0
        %v817 = vsel %vm809, 1, 0
        %v818 = vsel %vm810, 1, 0
        %819 = vset.pattern.permute.xlu0 0
        %820 = vperm.xlu0 %819, %v811
        %v821 = vpop.permute.xlu0 %820
        %822 = vset.pattern.permute.xlu0 0
        %823 = vperm.xlu0 %822, %v812
        %v824 = vpop.permute.xlu0 %823
        %825 = vset.pattern.permute.xlu0 0
        %826 = vperm.xlu0 %825, %v813
        %v827 = vpop.permute.xlu0 %826
        %828 = vset.pattern.permute.xlu0 0
        %829 = vperm.xlu0 %828, %v814
        %v830 = vpop.permute.xlu0 %829
        %831 = vset.pattern.permute.xlu0 0
        %832 = vperm.xlu0 %831, %v815
        %v833 = vpop.permute.xlu0 %832
        %834 = vset.pattern.permute.xlu0 0
        %835 = vperm.xlu0 %834, %v816
        %v836 = vpop.permute.xlu0 %835
        %837 = vset.pattern.permute.xlu0 0
        %838 = vperm.xlu0 %837, %v817
        %v839 = vpop.permute.xlu0 %838
        %840 = vset.pattern.permute.xlu0 0
        %841 = vperm.xlu0 %840, %v818
        %v842 = vpop.permute.xlu0 %841
        %vm843 = vcmp.eq.s32.totalorder %v821, 1
        %vm844 = vcmp.eq.s32.totalorder %v824, 1
        %vm845 = vcmp.eq.s32.totalorder %v827, 1
        %vm846 = vcmp.eq.s32.totalorder %v830, 1
        %vm847 = vcmp.eq.s32.totalorder %v833, 1
        %vm848 = vcmp.eq.s32.totalorder %v836, 1
        %vm849 = vcmp.eq.s32.totalorder %v839, 1
        %vm850 = vcmp.eq.s32.totalorder %v842, 1
        %v851 = vsel %vm843, %v387, -3e+38
        %v852 = vsel %vm844, %v390, -3e+38
        %v853 = vsel %vm845, %v395, -3e+38
        %v854 = vsel %vm846, %v398, -3e+38
        %v855 = vsel %vm847, %v403, -3e+38
        %v856 = vsel %vm848, %v406, -3e+38
        %v857 = vsel %vm849, %v411, -3e+38
        %v858 = vsel %vm850, %v414, -3e+38
        %v859 = vsel %vm418, %v851, -inf
        %v860 = vsel %vm418, %v852, -inf
        %v861 = vsel %vm418, %v853, -inf
        %v862 = vsel %vm418, %v854, -inf
        %v863 = vsel %vm418, %v855, -inf
        %v864 = vmax.f32 %v859, %v863
        %v865 = vsel %vm418, %v856, -inf
        %v866 = vmax.f32 %v860, %v865
        %v867 = vsel %vm418, %v857, -inf
        %v868 = vmax.f32 %v861, %v867
        %v869 = vsel %vm418, %v858, -inf
        %v870 = vmax.f32 %v862, %v869
        %v871 = vmax.f32 %v864, %v866
        %v872 = vmax.f32 %v868, %v870
        %v873 = vmax.f32 %v871, %v872
        %v874 = vrot.slane %v873, 4
        %v875 = vmax.f32 %v873, %v874
        %v876 = vrot.slane %v875, 2
        %v877 = vmax.f32 %v875, %v876
        %v878 = vrot.slane %v877, 1
        %v879 = vmax.f32 %v877, %v878
        %v880 = vld [vmem:[#allocation4 + $0x4] sm:$0x1]
        %v881 = vmax.f32 %v880, %v879
        %882 = vst.msk [vmem:[#allocation4 + $0x4] sm:$0x1] %vm441, %v881
        %vm883 = vcmp.eq.s32.totalorder %v475, 5
        %vm884 = vcmp.eq.s32.totalorder %v476, 5
        %vm885 = vcmp.eq.s32.totalorder %v477, 5
        %vm886 = vcmp.eq.s32.totalorder %v478, 5
        %vm887 = vcmp.eq.s32.totalorder %v479, 5
        %vm888 = vcmp.eq.s32.totalorder %v480, 5
        %vm889 = vcmp.eq.s32.totalorder %v481, 5
        %vm890 = vcmp.eq.s32.totalorder %v482, 5
        %v891 = vsel %vm883, 1, 0
        %v892 = vsel %vm884, 1, 0
        %v893 = vsel %vm885, 1, 0
        %v894 = vsel %vm886, 1, 0
        %v895 = vsel %vm887, 1, 0
        %v896 = vsel %vm888, 1, 0
        %v897 = vsel %vm889, 1, 0
        %v898 = vsel %vm890, 1, 0
        %899 = vset.pattern.permute.xlu0 0
        %900 = vperm.xlu0 %899, %v891
        %v901 = vpop.permute.xlu0 %900
        %902 = vset.pattern.permute.xlu0 0
        %903 = vperm.xlu0 %902, %v892
        %v904 = vpop.permute.xlu0 %903
        %905 = vset.pattern.permute.xlu0 0
        %906 = vperm.xlu0 %905, %v893
        %v907 = vpop.permute.xlu0 %906
        %908 = vset.pattern.permute.xlu0 0
        %909 = vperm.xlu0 %908, %v894
        %v910 = vpop.permute.xlu0 %909
        %911 = vset.pattern.permute.xlu0 0
        %912 = vperm.xlu0 %911, %v895
        %v913 = vpop.permute.xlu0 %912
        %914 = vset.pattern.permute.xlu0 0
        %915 = vperm.xlu0 %914, %v896
        %v916 = vpop.permute.xlu0 %915
        %917 = vset.pattern.permute.xlu0 0
        %918 = vperm.xlu0 %917, %v897
        %v919 = vpop.permute.xlu0 %918
        %920 = vset.pattern.permute.xlu0 0
        %921 = vperm.xlu0 %920, %v898
        %v922 = vpop.permute.xlu0 %921
        %vm923 = vcmp.eq.s32.totalorder %v901, 1
        %vm924 = vcmp.eq.s32.totalorder %v904, 1
        %vm925 = vcmp.eq.s32.totalorder %v907, 1
        %vm926 = vcmp.eq.s32.totalorder %v910, 1
        %vm927 = vcmp.eq.s32.totalorder %v913, 1
        %vm928 = vcmp.eq.s32.totalorder %v916, 1
        %vm929 = vcmp.eq.s32.totalorder %v919, 1
        %vm930 = vcmp.eq.s32.totalorder %v922, 1
        %v931 = vsel %vm923, %v387, -3e+38
        %v932 = vsel %vm924, %v390, -3e+38
        %v933 = vsel %vm925, %v395, -3e+38
        %v934 = vsel %vm926, %v398, -3e+38
        %v935 = vsel %vm927, %v403, -3e+38
        %v936 = vsel %vm928, %v406, -3e+38
        %v937 = vsel %vm929, %v411, -3e+38
        %v938 = vsel %vm930, %v414, -3e+38
        %v939 = vsel %vm418, %v931, -inf
        %v940 = vsel %vm418, %v932, -inf
        %v941 = vsel %vm418, %v933, -inf
        %v942 = vsel %vm418, %v934, -inf
        %v943 = vsel %vm418, %v935, -inf
        %v944 = vmax.f32 %v939, %v943
        %v945 = vsel %vm418, %v936, -inf
        %v946 = vmax.f32 %v940, %v945
        %v947 = vsel %vm418, %v937, -inf
        %v948 = vmax.f32 %v941, %v947
        %v949 = vsel %vm418, %v938, -inf
        %v950 = vmax.f32 %v942, %v949
        %v951 = vmax.f32 %v944, %v946
        %v952 = vmax.f32 %v948, %v950
        %v953 = vmax.f32 %v951, %v952
        %v954 = vrot.slane %v953, 4
        %v955 = vmax.f32 %v953, %v954
        %v956 = vrot.slane %v955, 2
        %v957 = vmax.f32 %v955, %v956
        %v958 = vrot.slane %v957, 1
        %v959 = vmax.f32 %v957, %v958
        %v960 = vld [vmem:[#allocation4 + $0x5] sm:$0x1]
        %v961 = vmax.f32 %v960, %v959
        %962 = vst.msk [vmem:[#allocation4 + $0x5] sm:$0x1] %vm441, %v961
        %vm963 = vcmp.eq.s32.totalorder %v475, 6
        %vm964 = vcmp.eq.s32.totalorder %v476, 6
        %vm965 = vcmp.eq.s32.totalorder %v477, 6
        %vm966 = vcmp.eq.s32.totalorder %v478, 6
        %vm967 = vcmp.eq.s32.totalorder %v479, 6
        %vm968 = vcmp.eq.s32.totalorder %v480, 6
        %vm969 = vcmp.eq.s32.totalorder %v481, 6
        %vm970 = vcmp.eq.s32.totalorder %v482, 6
        %v971 = vsel %vm963, 1, 0
        %v972 = vsel %vm964, 1, 0
        %v973 = vsel %vm965, 1, 0
        %v974 = vsel %vm966, 1, 0
        %v975 = vsel %vm967, 1, 0
        %v976 = vsel %vm968, 1, 0
        %v977 = vsel %vm969, 1, 0
        %v978 = vsel %vm970, 1, 0
        %979 = vset.pattern.permute.xlu0 0
        %980 = vperm.xlu0 %979, %v971
        %v981 = vpop.permute.xlu0 %980
        %982 = vset.pattern.permute.xlu0 0
        %983 = vperm.xlu0 %982, %v972
        %v984 = vpop.permute.xlu0 %983
        %985 = vset.pattern.permute.xlu0 0
        %986 = vperm.xlu0 %985, %v973
        %v987 = vpop.permute.xlu0 %986
        %988 = vset.pattern.permute.xlu0 0
        %989 = vperm.xlu0 %988, %v974
        %v990 = vpop.permute.xlu0 %989
        %991 = vset.pattern.permute.xlu0 0
        %992 = vperm.xlu0 %991, %v975
        %v993 = vpop.permute.xlu0 %992
        %994 = vset.pattern.permute.xlu0 0
        %995 = vperm.xlu0 %994, %v976
        %v996 = vpop.permute.xlu0 %995
        %997 = vset.pattern.permute.xlu0 0
        %998 = vperm.xlu0 %997, %v977
        %v999 = vpop.permute.xlu0 %998
        %1000 = vset.pattern.permute.xlu0 0
        %1001 = vperm.xlu0 %1000, %v978
        %v1002 = vpop.permute.xlu0 %1001
        %vm1003 = vcmp.eq.s32.totalorder %v981, 1
        %vm1004 = vcmp.eq.s32.totalorder %v984, 1
        %vm1005 = vcmp.eq.s32.totalorder %v987, 1
        %vm1006 = vcmp.eq.s32.totalorder %v990, 1
        %vm1007 = vcmp.eq.s32.totalorder %v993, 1
        %vm1008 = vcmp.eq.s32.totalorder %v996, 1
        %vm1009 = vcmp.eq.s32.totalorder %v999, 1
        %vm1010 = vcmp.eq.s32.totalorder %v1002, 1
        %v1011 = vsel %vm1003, %v387, -3e+38
        %v1012 = vsel %vm1004, %v390, -3e+38
        %v1013 = vsel %vm1005, %v395, -3e+38
        %v1014 = vsel %vm1006, %v398, -3e+38
        %v1015 = vsel %vm1007, %v403, -3e+38
        %v1016 = vsel %vm1008, %v406, -3e+38
        %v1017 = vsel %vm1009, %v411, -3e+38
        %v1018 = vsel %vm1010, %v414, -3e+38
        %v1019 = vsel %vm418, %v1011, -inf
        %v1020 = vsel %vm418, %v1012, -inf
        %v1021 = vsel %vm418, %v1013, -inf
        %v1022 = vsel %vm418, %v1014, -inf
        %v1023 = vsel %vm418, %v1015, -inf
        %v1024 = vmax.f32 %v1019, %v1023
        %v1025 = vsel %vm418, %v1016, -inf
        %v1026 = vmax.f32 %v1020, %v1025
        %v1027 = vsel %vm418, %v1017, -inf
        %v1028 = vmax.f32 %v1021, %v1027
        %v1029 = vsel %vm418, %v1018, -inf
        %v1030 = vmax.f32 %v1022, %v1029
        %v1031 = vmax.f32 %v1024, %v1026
        %v1032 = vmax.f32 %v1028, %v1030
        %v1033 = vmax.f32 %v1031, %v1032
        %v1034 = vrot.slane %v1033, 4
        %v1035 = vmax.f32 %v1033, %v1034
        %v1036 = vrot.slane %v1035, 2
        %v1037 = vmax.f32 %v1035, %v1036
        %v1038 = vrot.slane %v1037, 1
        %v1039 = vmax.f32 %v1037, %v1038
        %v1040 = vld [vmem:[#allocation4 + $0x6] sm:$0x1]
        %v1041 = vmax.f32 %v1040, %v1039
        %1042 = vst.msk [vmem:[#allocation4 + $0x6] sm:$0x1] %vm441, %v1041
        %vm1043 = vcmp.eq.s32.totalorder %v475, 7
        %vm1044 = vcmp.eq.s32.totalorder %v476, 7
        %vm1045 = vcmp.eq.s32.totalorder %v477, 7
        %vm1046 = vcmp.eq.s32.totalorder %v478, 7
        %vm1047 = vcmp.eq.s32.totalorder %v479, 7
        %vm1048 = vcmp.eq.s32.totalorder %v480, 7
        %vm1049 = vcmp.eq.s32.totalorder %v481, 7
        %vm1050 = vcmp.eq.s32.totalorder %v482, 7
        %v1051 = vsel %vm1043, 1, 0
        %v1052 = vsel %vm1044, 1, 0
        %v1053 = vsel %vm1045, 1, 0
        %v1054 = vsel %vm1046, 1, 0
        %v1055 = vsel %vm1047, 1, 0
        %v1056 = vsel %vm1048, 1, 0
        %v1057 = vsel %vm1049, 1, 0
        %v1058 = vsel %vm1050, 1, 0
        %1059 = vset.pattern.permute.xlu0 0
        %1060 = vperm.xlu0 %1059, %v1051
        %v1061 = vpop.permute.xlu0 %1060
        %1062 = vset.pattern.permute.xlu0 0
        %1063 = vperm.xlu0 %1062, %v1052
        %v1064 = vpop.permute.xlu0 %1063
        %1065 = vset.pattern.permute.xlu0 0
        %1066 = vperm.xlu0 %1065, %v1053
        %v1067 = vpop.permute.xlu0 %1066
        %1068 = vset.pattern.permute.xlu0 0
        %1069 = vperm.xlu0 %1068, %v1054
        %v1070 = vpop.permute.xlu0 %1069
        %1071 = vset.pattern.permute.xlu0 0
        %1072 = vperm.xlu0 %1071, %v1055
        %v1073 = vpop.permute.xlu0 %1072
        %1074 = vset.pattern.permute.xlu0 0
        %1075 = vperm.xlu0 %1074, %v1056
        %v1076 = vpop.permute.xlu0 %1075
        %1077 = vset.pattern.permute.xlu0 0
        %1078 = vperm.xlu0 %1077, %v1057
        %v1079 = vpop.permute.xlu0 %1078
        %1080 = vset.pattern.permute.xlu0 0
        %1081 = vperm.xlu0 %1080, %v1058
        %v1082 = vpop.permute.xlu0 %1081
        %vm1083 = vcmp.eq.s32.totalorder %v1061, 1
        %vm1084 = vcmp.eq.s32.totalorder %v1064, 1
        %vm1085 = vcmp.eq.s32.totalorder %v1067, 1
        %vm1086 = vcmp.eq.s32.totalorder %v1070, 1
        %vm1087 = vcmp.eq.s32.totalorder %v1073, 1
        %vm1088 = vcmp.eq.s32.totalorder %v1076, 1
        %vm1089 = vcmp.eq.s32.totalorder %v1079, 1
        %vm1090 = vcmp.eq.s32.totalorder %v1082, 1
        %v1091 = vsel %vm1083, %v387, -3e+38
        %v1092 = vsel %vm1084, %v390, -3e+38
        %v1093 = vsel %vm1085, %v395, -3e+38
        %v1094 = vsel %vm1086, %v398, -3e+38
        %v1095 = vsel %vm1087, %v403, -3e+38
        %v1096 = vsel %vm1088, %v406, -3e+38
        %v1097 = vsel %vm1089, %v411, -3e+38
        %v1098 = vsel %vm1090, %v414, -3e+38
        %v1099 = vsel %vm418, %v1091, -inf
        %v1100 = vsel %vm418, %v1092, -inf
        %v1101 = vsel %vm418, %v1093, -inf
        %v1102 = vsel %vm418, %v1094, -inf
        %v1103 = vsel %vm418, %v1095, -inf
        %v1104 = vmax.f32 %v1099, %v1103
        %v1105 = vsel %vm418, %v1096, -inf
        %v1106 = vmax.f32 %v1100, %v1105
        %v1107 = vsel %vm418, %v1097, -inf
        %v1108 = vmax.f32 %v1101, %v1107
        %v1109 = vsel %vm418, %v1098, -inf
        %v1110 = vmax.f32 %v1102, %v1109
        %v1111 = vmax.f32 %v1104, %v1106
        %v1112 = vmax.f32 %v1108, %v1110
        %v1113 = vmax.f32 %v1111, %v1112
        %v1114 = vrot.slane %v1113, 4
        %v1115 = vmax.f32 %v1113, %v1114
        %v1116 = vrot.slane %v1115, 2
        %v1117 = vmax.f32 %v1115, %v1116
        %v1118 = vrot.slane %v1117, 1
        %v1119 = vmax.f32 %v1117, %v1118
        %v1120 = vld [vmem:[#allocation4 + $0x7] sm:$0x1]
        %v1121 = vmax.f32 %v1120, %v1119
        %1122 = vst.msk [vmem:[#allocation4 + $0x7] sm:$0x1] %vm441, %v1121
        %vm1123 = vcmp.eq.s32.totalorder %v475, 8
        %vm1124 = vcmp.eq.s32.totalorder %v476, 8
        %vm1125 = vcmp.eq.s32.totalorder %v477, 8
        %vm1126 = vcmp.eq.s32.totalorder %v478, 8
        %vm1127 = vcmp.eq.s32.totalorder %v479, 8
        %vm1128 = vcmp.eq.s32.totalorder %v480, 8
        %vm1129 = vcmp.eq.s32.totalorder %v481, 8
        %vm1130 = vcmp.eq.s32.totalorder %v482, 8
        %v1131 = vsel %vm1123, 1, 0
        %v1132 = vsel %vm1124, 1, 0
        %v1133 = vsel %vm1125, 1, 0
        %v1134 = vsel %vm1126, 1, 0
        %v1135 = vsel %vm1127, 1, 0
        %v1136 = vsel %vm1128, 1, 0
        %v1137 = vsel %vm1129, 1, 0
        %v1138 = vsel %vm1130, 1, 0
        %1139 = vset.pattern.permute.xlu0 0
        %1140 = vperm.xlu0 %1139, %v1131
        %v1141 = vpop.permute.xlu0 %1140
        %1142 = vset.pattern.permute.xlu0 0
        %1143 = vperm.xlu0 %1142, %v1132
        %v1144 = vpop.permute.xlu0 %1143
        %1145 = vset.pattern.permute.xlu0 0
        %1146 = vperm.xlu0 %1145, %v1133
        %v1147 = vpop.permute.xlu0 %1146
        %1148 = vset.pattern.permute.xlu0 0
        %1149 = vperm.xlu0 %1148, %v1134
        %v1150 = vpop.permute.xlu0 %1149
        %1151 = vset.pattern.permute.xlu0 0
        %1152 = vperm.xlu0 %1151, %v1135
        %v1153 = vpop.permute.xlu0 %1152
        %1154 = vset.pattern.permute.xlu0 0
        %1155 = vperm.xlu0 %1154, %v1136
        %v1156 = vpop.permute.xlu0 %1155
        %1157 = vset.pattern.permute.xlu0 0
        %1158 = vperm.xlu0 %1157, %v1137
        %v1159 = vpop.permute.xlu0 %1158
        %1160 = vset.pattern.permute.xlu0 0
        %1161 = vperm.xlu0 %1160, %v1138
        %v1162 = vpop.permute.xlu0 %1161
        %vm1163 = vcmp.eq.s32.totalorder %v1141, 1
        %vm1164 = vcmp.eq.s32.totalorder %v1144, 1
        %vm1165 = vcmp.eq.s32.totalorder %v1147, 1
        %vm1166 = vcmp.eq.s32.totalorder %v1150, 1
        %vm1167 = vcmp.eq.s32.totalorder %v1153, 1
        %vm1168 = vcmp.eq.s32.totalorder %v1156, 1
        %vm1169 = vcmp.eq.s32.totalorder %v1159, 1
        %vm1170 = vcmp.eq.s32.totalorder %v1162, 1
        %v1171 = vsel %vm1163, %v387, -3e+38
        %v1172 = vsel %vm1164, %v390, -3e+38
        %v1173 = vsel %vm1165, %v395, -3e+38
        %v1174 = vsel %vm1166, %v398, -3e+38
        %v1175 = vsel %vm1167, %v403, -3e+38
        %v1176 = vsel %vm1168, %v406, -3e+38
        %v1177 = vsel %vm1169, %v411, -3e+38
        %v1178 = vsel %vm1170, %v414, -3e+38
        %v1179 = vsel %vm418, %v1171, -inf
        %v1180 = vsel %vm418, %v1172, -inf
        %v1181 = vsel %vm418, %v1173, -inf
        %v1182 = vsel %vm418, %v1174, -inf
        %v1183 = vsel %vm418, %v1175, -inf
        %v1184 = vmax.f32 %v1179, %v1183
        %v1185 = vsel %vm418, %v1176, -inf
        %v1186 = vmax.f32 %v1180, %v1185
        %v1187 = vsel %vm418, %v1177, -inf
        %v1188 = vmax.f32 %v1181, %v1187
        %v1189 = vsel %vm418, %v1178, -inf
        %v1190 = vmax.f32 %v1182, %v1189
        %v1191 = vmax.f32 %v1184, %v1186
        %v1192 = vmax.f32 %v1188, %v1190
        %v1193 = vmax.f32 %v1191, %v1192
        %v1194 = vrot.slane %v1193, 4
        %v1195 = vmax.f32 %v1193, %v1194
        %v1196 = vrot.slane %v1195, 2
        %v1197 = vmax.f32 %v1195, %v1196
        %v1198 = vrot.slane %v1197, 1
        %v1199 = vmax.f32 %v1197, %v1198
        %v1200 = vld [vmem:[#allocation4 + $0x8] sm:$0x1]
        %v1201 = vmax.f32 %v1200, %v1199
        %1202 = vst.msk [vmem:[#allocation4 + $0x8] sm:$0x1] %vm441, %v1201
        %vm1203 = vcmp.eq.s32.totalorder %v475, 9
        %vm1204 = vcmp.eq.s32.totalorder %v476, 9
        %vm1205 = vcmp.eq.s32.totalorder %v477, 9
        %vm1206 = vcmp.eq.s32.totalorder %v478, 9
        %vm1207 = vcmp.eq.s32.totalorder %v479, 9
        %vm1208 = vcmp.eq.s32.totalorder %v480, 9
        %vm1209 = vcmp.eq.s32.totalorder %v481, 9
        %vm1210 = vcmp.eq.s32.totalorder %v482, 9
        %v1211 = vsel %vm1203, 1, 0
        %v1212 = vsel %vm1204, 1, 0
        %v1213 = vsel %vm1205, 1, 0
        %v1214 = vsel %vm1206, 1, 0
        %v1215 = vsel %vm1207, 1, 0
        %v1216 = vsel %vm1208, 1, 0
        %v1217 = vsel %vm1209, 1, 0
        %v1218 = vsel %vm1210, 1, 0
        %1219 = vset.pattern.permute.xlu0 0
        %1220 = vperm.xlu0 %1219, %v1211
        %v1221 = vpop.permute.xlu0 %1220
        %1222 = vset.pattern.permute.xlu0 0
        %1223 = vperm.xlu0 %1222, %v1212
        %v1224 = vpop.permute.xlu0 %1223
        %1225 = vset.pattern.permute.xlu0 0
        %1226 = vperm.xlu0 %1225, %v1213
        %v1227 = vpop.permute.xlu0 %1226
        %1228 = vset.pattern.permute.xlu0 0
        %1229 = vperm.xlu0 %1228, %v1214
        %v1230 = vpop.permute.xlu0 %1229
        %1231 = vset.pattern.permute.xlu0 0
        %1232 = vperm.xlu0 %1231, %v1215
        %v1233 = vpop.permute.xlu0 %1232
        %1234 = vset.pattern.permute.xlu0 0
        %1235 = vperm.xlu0 %1234, %v1216
        %v1236 = vpop.permute.xlu0 %1235
        %1237 = vset.pattern.permute.xlu0 0
        %1238 = vperm.xlu0 %1237, %v1217
        %v1239 = vpop.permute.xlu0 %1238
        %1240 = vset.pattern.permute.xlu0 0
        %1241 = vperm.xlu0 %1240, %v1218
        %v1242 = vpop.permute.xlu0 %1241
        %vm1243 = vcmp.eq.s32.totalorder %v1221, 1
        %vm1244 = vcmp.eq.s32.totalorder %v1224, 1
        %vm1245 = vcmp.eq.s32.totalorder %v1227, 1
        %vm1246 = vcmp.eq.s32.totalorder %v1230, 1
        %vm1247 = vcmp.eq.s32.totalorder %v1233, 1
        %vm1248 = vcmp.eq.s32.totalorder %v1236, 1
        %vm1249 = vcmp.eq.s32.totalorder %v1239, 1
        %vm1250 = vcmp.eq.s32.totalorder %v1242, 1
        %v1251 = vsel %vm1243, %v387, -3e+38
        %v1252 = vsel %vm1244, %v390, -3e+38
        %v1253 = vsel %vm1245, %v395, -3e+38
        %v1254 = vsel %vm1246, %v398, -3e+38
        %v1255 = vsel %vm1247, %v403, -3e+38
        %v1256 = vsel %vm1248, %v406, -3e+38
        %v1257 = vsel %vm1249, %v411, -3e+38
        %v1258 = vsel %vm1250, %v414, -3e+38
        %v1259 = vsel %vm418, %v1251, -inf
        %v1260 = vsel %vm418, %v1252, -inf
        %v1261 = vsel %vm418, %v1253, -inf
        %v1262 = vsel %vm418, %v1254, -inf
        %v1263 = vsel %vm418, %v1255, -inf
        %v1264 = vmax.f32 %v1259, %v1263
        %v1265 = vsel %vm418, %v1256, -inf
        %v1266 = vmax.f32 %v1260, %v1265
        %v1267 = vsel %vm418, %v1257, -inf
        %v1268 = vmax.f32 %v1261, %v1267
        %v1269 = vsel %vm418, %v1258, -inf
        %v1270 = vmax.f32 %v1262, %v1269
        %v1271 = vmax.f32 %v1264, %v1266
        %v1272 = vmax.f32 %v1268, %v1270
        %v1273 = vmax.f32 %v1271, %v1272
        %v1274 = vrot.slane %v1273, 4
        %v1275 = vmax.f32 %v1273, %v1274
        %v1276 = vrot.slane %v1275, 2
        %v1277 = vmax.f32 %v1275, %v1276
        %v1278 = vrot.slane %v1277, 1
        %v1279 = vmax.f32 %v1277, %v1278
        %v1280 = vld [vmem:[#allocation4 + $0x9] sm:$0x1]
        %v1281 = vmax.f32 %v1280, %v1279
        %1282 = vst.msk [vmem:[#allocation4 + $0x9] sm:$0x1] %vm441, %v1281
        %vm1283 = vcmp.eq.s32.totalorder %v475, 10
        %vm1284 = vcmp.eq.s32.totalorder %v476, 10
        %vm1285 = vcmp.eq.s32.totalorder %v477, 10
        %vm1286 = vcmp.eq.s32.totalorder %v478, 10
        %vm1287 = vcmp.eq.s32.totalorder %v479, 10
        %vm1288 = vcmp.eq.s32.totalorder %v480, 10
        %vm1289 = vcmp.eq.s32.totalorder %v481, 10
        %vm1290 = vcmp.eq.s32.totalorder %v482, 10
        %v1291 = vsel %vm1283, 1, 0
        %v1292 = vsel %vm1284, 1, 0
        %v1293 = vsel %vm1285, 1, 0
        %v1294 = vsel %vm1286, 1, 0
        %v1295 = vsel %vm1287, 1, 0
        %v1296 = vsel %vm1288, 1, 0
        %v1297 = vsel %vm1289, 1, 0
        %v1298 = vsel %vm1290, 1, 0
        %1299 = vset.pattern.permute.xlu0 0
        %1300 = vperm.xlu0 %1299, %v1291
        %v1301 = vpop.permute.xlu0 %1300
        %1302 = vset.pattern.permute.xlu0 0
        %1303 = vperm.xlu0 %1302, %v1292
        %v1304 = vpop.permute.xlu0 %1303
        %1305 = vset.pattern.permute.xlu0 0
        %1306 = vperm.xlu0 %1305, %v1293
        %v1307 = vpop.permute.xlu0 %1306
        %1308 = vset.pattern.permute.xlu0 0
        %1309 = vperm.xlu0 %1308, %v1294
        %v1310 = vpop.permute.xlu0 %1309
        %1311 = vset.pattern.permute.xlu0 0
        %1312 = vperm.xlu0 %1311, %v1295
        %v1313 = vpop.permute.xlu0 %1312
        %1314 = vset.pattern.permute.xlu0 0
        %1315 = vperm.xlu0 %1314, %v1296
        %v1316 = vpop.permute.xlu0 %1315
        %1317 = vset.pattern.permute.xlu0 0
        %1318 = vperm.xlu0 %1317, %v1297
        %v1319 = vpop.permute.xlu0 %1318
        %1320 = vset.pattern.permute.xlu0 0
        %1321 = vperm.xlu0 %1320, %v1298
        %v1322 = vpop.permute.xlu0 %1321
        %vm1323 = vcmp.eq.s32.totalorder %v1301, 1
        %vm1324 = vcmp.eq.s32.totalorder %v1304, 1
        %vm1325 = vcmp.eq.s32.totalorder %v1307, 1
        %vm1326 = vcmp.eq.s32.totalorder %v1310, 1
        %vm1327 = vcmp.eq.s32.totalorder %v1313, 1
        %vm1328 = vcmp.eq.s32.totalorder %v1316, 1
        %vm1329 = vcmp.eq.s32.totalorder %v1319, 1
        %vm1330 = vcmp.eq.s32.totalorder %v1322, 1
        %v1331 = vsel %vm1323, %v387, -3e+38
        %v1332 = vsel %vm1324, %v390, -3e+38
        %v1333 = vsel %vm1325, %v395, -3e+38
        %v1334 = vsel %vm1326, %v398, -3e+38
        %v1335 = vsel %vm1327, %v403, -3e+38
        %v1336 = vsel %vm1328, %v406, -3e+38
        %v1337 = vsel %vm1329, %v411, -3e+38
        %v1338 = vsel %vm1330, %v414, -3e+38
        %v1339 = vsel %vm418, %v1331, -inf
        %v1340 = vsel %vm418, %v1332, -inf
        %v1341 = vsel %vm418, %v1333, -inf
        %v1342 = vsel %vm418, %v1334, -inf
        %v1343 = vsel %vm418, %v1335, -inf
        %v1344 = vmax.f32 %v1339, %v1343
        %v1345 = vsel %vm418, %v1336, -inf
        %v1346 = vmax.f32 %v1340, %v1345
        %v1347 = vsel %vm418, %v1337, -inf
        %v1348 = vmax.f32 %v1341, %v1347
        %v1349 = vsel %vm418, %v1338, -inf
        %v1350 = vmax.f32 %v1342, %v1349
        %v1351 = vmax.f32 %v1344, %v1346
        %v1352 = vmax.f32 %v1348, %v1350
        %v1353 = vmax.f32 %v1351, %v1352
        %v1354 = vrot.slane %v1353, 4
        %v1355 = vmax.f32 %v1353, %v1354
        %v1356 = vrot.slane %v1355, 2
        %v1357 = vmax.f32 %v1355, %v1356
        %v1358 = vrot.slane %v1357, 1
        %v1359 = vmax.f32 %v1357, %v1358
        %v1360 = vld [vmem:[#allocation4 + $0xa] sm:$0x1]
        %v1361 = vmax.f32 %v1360, %v1359
        %1362 = vst.msk [vmem:[#allocation4 + $0xa] sm:$0x1] %vm441, %v1361
        %vm1363 = vcmp.eq.s32.totalorder %v475, 11
        %vm1364 = vcmp.eq.s32.totalorder %v476, 11
        %vm1365 = vcmp.eq.s32.totalorder %v477, 11
        %vm1366 = vcmp.eq.s32.totalorder %v478, 11
        %vm1367 = vcmp.eq.s32.totalorder %v479, 11
        %vm1368 = vcmp.eq.s32.totalorder %v480, 11
        %vm1369 = vcmp.eq.s32.totalorder %v481, 11
        %vm1370 = vcmp.eq.s32.totalorder %v482, 11
        %v1371 = vsel %vm1363, 1, 0
        %v1372 = vsel %vm1364, 1, 0
        %v1373 = vsel %vm1365, 1, 0
        %v1374 = vsel %vm1366, 1, 0
        %v1375 = vsel %vm1367, 1, 0
        %v1376 = vsel %vm1368, 1, 0
        %v1377 = vsel %vm1369, 1, 0
        %v1378 = vsel %vm1370, 1, 0
        %1379 = vset.pattern.permute.xlu0 0
        %1380 = vperm.xlu0 %1379, %v1371
        %v1381 = vpop.permute.xlu0 %1380
        %1382 = vset.pattern.permute.xlu0 0
        %1383 = vperm.xlu0 %1382, %v1372
        %v1384 = vpop.permute.xlu0 %1383
        %1385 = vset.pattern.permute.xlu0 0
        %1386 = vperm.xlu0 %1385, %v1373
        %v1387 = vpop.permute.xlu0 %1386
        %1388 = vset.pattern.permute.xlu0 0
        %1389 = vperm.xlu0 %1388, %v1374
        %v1390 = vpop.permute.xlu0 %1389
        %1391 = vset.pattern.permute.xlu0 0
        %1392 = vperm.xlu0 %1391, %v1375
        %v1393 = vpop.permute.xlu0 %1392
        %1394 = vset.pattern.permute.xlu0 0
        %1395 = vperm.xlu0 %1394, %v1376
        %v1396 = vpop.permute.xlu0 %1395
        %1397 = vset.pattern.permute.xlu0 0
        %1398 = vperm.xlu0 %1397, %v1377
        %v1399 = vpop.permute.xlu0 %1398
        %1400 = vset.pattern.permute.xlu0 0
        %1401 = vperm.xlu0 %1400, %v1378
        %v1402 = vpop.permute.xlu0 %1401
        %vm1403 = vcmp.eq.s32.totalorder %v1381, 1
        %vm1404 = vcmp.eq.s32.totalorder %v1384, 1
        %vm1405 = vcmp.eq.s32.totalorder %v1387, 1
        %vm1406 = vcmp.eq.s32.totalorder %v1390, 1
        %vm1407 = vcmp.eq.s32.totalorder %v1393, 1
        %vm1408 = vcmp.eq.s32.totalorder %v1396, 1
        %vm1409 = vcmp.eq.s32.totalorder %v1399, 1
        %vm1410 = vcmp.eq.s32.totalorder %v1402, 1
        %v1411 = vsel %vm1403, %v387, -3e+38
        %v1412 = vsel %vm1404, %v390, -3e+38
        %v1413 = vsel %vm1405, %v395, -3e+38
        %v1414 = vsel %vm1406, %v398, -3e+38
        %v1415 = vsel %vm1407, %v403, -3e+38
        %v1416 = vsel %vm1408, %v406, -3e+38
        %v1417 = vsel %vm1409, %v411, -3e+38
        %v1418 = vsel %vm1410, %v414, -3e+38
        %v1419 = vsel %vm418, %v1411, -inf
        %v1420 = vsel %vm418, %v1412, -inf
        %v1421 = vsel %vm418, %v1413, -inf
        %v1422 = vsel %vm418, %v1414, -inf
        %v1423 = vsel %vm418, %v1415, -inf
        %v1424 = vmax.f32 %v1419, %v1423
        %v1425 = vsel %vm418, %v1416, -inf
        %v1426 = vmax.f32 %v1420, %v1425
        %v1427 = vsel %vm418, %v1417, -inf
        %v1428 = vmax.f32 %v1421, %v1427
        %v1429 = vsel %vm418, %v1418, -inf
        %v1430 = vmax.f32 %v1422, %v1429
        %v1431 = vmax.f32 %v1424, %v1426
        %v1432 = vmax.f32 %v1428, %v1430
        %v1433 = vmax.f32 %v1431, %v1432
        %v1434 = vrot.slane %v1433, 4
        %v1435 = vmax.f32 %v1433, %v1434
        %v1436 = vrot.slane %v1435, 2
        %v1437 = vmax.f32 %v1435, %v1436
        %v1438 = vrot.slane %v1437, 1
        %v1439 = vmax.f32 %v1437, %v1438
        %v1440 = vld [vmem:[#allocation4 + $0xb] sm:$0x1]
        %v1441 = vmax.f32 %v1440, %v1439
        %1442 = vst.msk [vmem:[#allocation4 + $0xb] sm:$0x1] %vm441, %v1441
        %vm1443 = vcmp.eq.s32.totalorder %v475, 12
        %vm1444 = vcmp.eq.s32.totalorder %v476, 12
        %vm1445 = vcmp.eq.s32.totalorder %v477, 12
        %vm1446 = vcmp.eq.s32.totalorder %v478, 12
        %vm1447 = vcmp.eq.s32.totalorder %v479, 12
        %vm1448 = vcmp.eq.s32.totalorder %v480, 12
        %vm1449 = vcmp.eq.s32.totalorder %v481, 12
        %vm1450 = vcmp.eq.s32.totalorder %v482, 12
        %v1451 = vsel %vm1443, 1, 0
        %v1452 = vsel %vm1444, 1, 0
        %v1453 = vsel %vm1445, 1, 0
        %v1454 = vsel %vm1446, 1, 0
        %v1455 = vsel %vm1447, 1, 0
        %v1456 = vsel %vm1448, 1, 0
        %v1457 = vsel %vm1449, 1, 0
        %v1458 = vsel %vm1450, 1, 0
        %1459 = vset.pattern.permute.xlu0 0
        %1460 = vperm.xlu0 %1459, %v1451
        %v1461 = vpop.permute.xlu0 %1460
        %1462 = vset.pattern.permute.xlu0 0
        %1463 = vperm.xlu0 %1462, %v1452
        %v1464 = vpop.permute.xlu0 %1463
        %1465 = vset.pattern.permute.xlu0 0
        %1466 = vperm.xlu0 %1465, %v1453
        %v1467 = vpop.permute.xlu0 %1466
        %1468 = vset.pattern.permute.xlu0 0
        %1469 = vperm.xlu0 %1468, %v1454
        %v1470 = vpop.permute.xlu0 %1469
        %1471 = vset.pattern.permute.xlu0 0
        %1472 = vperm.xlu0 %1471, %v1455
        %v1473 = vpop.permute.xlu0 %1472
        %1474 = vset.pattern.permute.xlu0 0
        %1475 = vperm.xlu0 %1474, %v1456
        %v1476 = vpop.permute.xlu0 %1475
        %1477 = vset.pattern.permute.xlu0 0
        %1478 = vperm.xlu0 %1477, %v1457
        %v1479 = vpop.permute.xlu0 %1478
        %1480 = vset.pattern.permute.xlu0 0
        %1481 = vperm.xlu0 %1480, %v1458
        %v1482 = vpop.permute.xlu0 %1481
        %vm1483 = vcmp.eq.s32.totalorder %v1461, 1
        %vm1484 = vcmp.eq.s32.totalorder %v1464, 1
        %vm1485 = vcmp.eq.s32.totalorder %v1467, 1
        %vm1486 = vcmp.eq.s32.totalorder %v1470, 1
        %vm1487 = vcmp.eq.s32.totalorder %v1473, 1
        %vm1488 = vcmp.eq.s32.totalorder %v1476, 1
        %vm1489 = vcmp.eq.s32.totalorder %v1479, 1
        %vm1490 = vcmp.eq.s32.totalorder %v1482, 1
        %v1491 = vsel %vm1483, %v387, -3e+38
        %v1492 = vsel %vm1484, %v390, -3e+38
        %v1493 = vsel %vm1485, %v395, -3e+38
        %v1494 = vsel %vm1486, %v398, -3e+38
        %v1495 = vsel %vm1487, %v403, -3e+38
        %v1496 = vsel %vm1488, %v406, -3e+38
        %v1497 = vsel %vm1489, %v411, -3e+38
        %v1498 = vsel %vm1490, %v414, -3e+38
        %v1499 = vsel %vm418, %v1491, -inf
        %v1500 = vsel %vm418, %v1492, -inf
        %v1501 = vsel %vm418, %v1493, -inf
        %v1502 = vsel %vm418, %v1494, -inf
        %v1503 = vsel %vm418, %v1495, -inf
        %v1504 = vmax.f32 %v1499, %v1503
        %v1505 = vsel %vm418, %v1496, -inf
        %v1506 = vmax.f32 %v1500, %v1505
        %v1507 = vsel %vm418, %v1497, -inf
        %v1508 = vmax.f32 %v1501, %v1507
        %v1509 = vsel %vm418, %v1498, -inf
        %v1510 = vmax.f32 %v1502, %v1509
        %v1511 = vmax.f32 %v1504, %v1506
        %v1512 = vmax.f32 %v1508, %v1510
        %v1513 = vmax.f32 %v1511, %v1512
        %v1514 = vrot.slane %v1513, 4
        %v1515 = vmax.f32 %v1513, %v1514
        %v1516 = vrot.slane %v1515, 2
        %v1517 = vmax.f32 %v1515, %v1516
        %v1518 = vrot.slane %v1517, 1
        %v1519 = vmax.f32 %v1517, %v1518
        %v1520 = vld [vmem:[#allocation4 + $0xc] sm:$0x1]
        %v1521 = vmax.f32 %v1520, %v1519
        %1522 = vst.msk [vmem:[#allocation4 + $0xc] sm:$0x1] %vm441, %v1521
        %vm1523 = vcmp.eq.s32.totalorder %v475, 13
        %vm1524 = vcmp.eq.s32.totalorder %v476, 13
        %vm1525 = vcmp.eq.s32.totalorder %v477, 13
        %vm1526 = vcmp.eq.s32.totalorder %v478, 13
        %vm1527 = vcmp.eq.s32.totalorder %v479, 13
        %vm1528 = vcmp.eq.s32.totalorder %v480, 13
        %vm1529 = vcmp.eq.s32.totalorder %v481, 13
        %vm1530 = vcmp.eq.s32.totalorder %v482, 13
        %v1531 = vsel %vm1523, 1, 0
        %v1532 = vsel %vm1524, 1, 0
        %v1533 = vsel %vm1525, 1, 0
        %v1534 = vsel %vm1526, 1, 0
        %v1535 = vsel %vm1527, 1, 0
        %v1536 = vsel %vm1528, 1, 0
        %v1537 = vsel %vm1529, 1, 0
        %v1538 = vsel %vm1530, 1, 0
        %1539 = vset.pattern.permute.xlu0 0
        %1540 = vperm.xlu0 %1539, %v1531
        %v1541 = vpop.permute.xlu0 %1540
        %1542 = vset.pattern.permute.xlu0 0
        %1543 = vperm.xlu0 %1542, %v1532
        %v1544 = vpop.permute.xlu0 %1543
        %1545 = vset.pattern.permute.xlu0 0
        %1546 = vperm.xlu0 %1545, %v1533
        %v1547 = vpop.permute.xlu0 %1546
        %1548 = vset.pattern.permute.xlu0 0
        %1549 = vperm.xlu0 %1548, %v1534
        %v1550 = vpop.permute.xlu0 %1549
        %1551 = vset.pattern.permute.xlu0 0
        %1552 = vperm.xlu0 %1551, %v1535
        %v1553 = vpop.permute.xlu0 %1552
        %1554 = vset.pattern.permute.xlu0 0
        %1555 = vperm.xlu0 %1554, %v1536
        %v1556 = vpop.permute.xlu0 %1555
        %1557 = vset.pattern.permute.xlu0 0
        %1558 = vperm.xlu0 %1557, %v1537
        %v1559 = vpop.permute.xlu0 %1558
        %1560 = vset.pattern.permute.xlu0 0
        %1561 = vperm.xlu0 %1560, %v1538
        %v1562 = vpop.permute.xlu0 %1561
        %vm1563 = vcmp.eq.s32.totalorder %v1541, 1
        %vm1564 = vcmp.eq.s32.totalorder %v1544, 1
        %vm1565 = vcmp.eq.s32.totalorder %v1547, 1
        %vm1566 = vcmp.eq.s32.totalorder %v1550, 1
        %vm1567 = vcmp.eq.s32.totalorder %v1553, 1
        %vm1568 = vcmp.eq.s32.totalorder %v1556, 1
        %vm1569 = vcmp.eq.s32.totalorder %v1559, 1
        %vm1570 = vcmp.eq.s32.totalorder %v1562, 1
        %v1571 = vsel %vm1563, %v387, -3e+38
        %v1572 = vsel %vm1564, %v390, -3e+38
        %v1573 = vsel %vm1565, %v395, -3e+38
        %v1574 = vsel %vm1566, %v398, -3e+38
        %v1575 = vsel %vm1567, %v403, -3e+38
        %v1576 = vsel %vm1568, %v406, -3e+38
        %v1577 = vsel %vm1569, %v411, -3e+38
        %v1578 = vsel %vm1570, %v414, -3e+38
        %v1579 = vsel %vm418, %v1571, -inf
        %v1580 = vsel %vm418, %v1572, -inf
        %v1581 = vsel %vm418, %v1573, -inf
        %v1582 = vsel %vm418, %v1574, -inf
        %v1583 = vsel %vm418, %v1575, -inf
        %v1584 = vmax.f32 %v1579, %v1583
        %v1585 = vsel %vm418, %v1576, -inf
        %v1586 = vmax.f32 %v1580, %v1585
        %v1587 = vsel %vm418, %v1577, -inf
        %v1588 = vmax.f32 %v1581, %v1587
        %v1589 = vsel %vm418, %v1578, -inf
        %v1590 = vmax.f32 %v1582, %v1589
        %v1591 = vmax.f32 %v1584, %v1586
        %v1592 = vmax.f32 %v1588, %v1590
        %v1593 = vmax.f32 %v1591, %v1592
        %v1594 = vrot.slane %v1593, 4
        %v1595 = vmax.f32 %v1593, %v1594
        %v1596 = vrot.slane %v1595, 2
        %v1597 = vmax.f32 %v1595, %v1596
        %v1598 = vrot.slane %v1597, 1
        %v1599 = vmax.f32 %v1597, %v1598
        %v1600 = vld [vmem:[#allocation4 + $0xd] sm:$0x1]
        %v1601 = vmax.f32 %v1600, %v1599
        %1602 = vst.msk [vmem:[#allocation4 + $0xd] sm:$0x1] %vm441, %v1601
        %vm1603 = vcmp.eq.s32.totalorder %v475, 14
        %vm1604 = vcmp.eq.s32.totalorder %v476, 14
        %vm1605 = vcmp.eq.s32.totalorder %v477, 14
        %vm1606 = vcmp.eq.s32.totalorder %v478, 14
        %vm1607 = vcmp.eq.s32.totalorder %v479, 14
        %vm1608 = vcmp.eq.s32.totalorder %v480, 14
        %vm1609 = vcmp.eq.s32.totalorder %v481, 14
        %vm1610 = vcmp.eq.s32.totalorder %v482, 14
        %v1611 = vsel %vm1603, 1, 0
        %v1612 = vsel %vm1604, 1, 0
        %v1613 = vsel %vm1605, 1, 0
        %v1614 = vsel %vm1606, 1, 0
        %v1615 = vsel %vm1607, 1, 0
        %v1616 = vsel %vm1608, 1, 0
        %v1617 = vsel %vm1609, 1, 0
        %v1618 = vsel %vm1610, 1, 0
        %1619 = vset.pattern.permute.xlu0 0
        %1620 = vperm.xlu0 %1619, %v1611
        %v1621 = vpop.permute.xlu0 %1620
        %1622 = vset.pattern.permute.xlu0 0
        %1623 = vperm.xlu0 %1622, %v1612
        %v1624 = vpop.permute.xlu0 %1623
        %1625 = vset.pattern.permute.xlu0 0
        %1626 = vperm.xlu0 %1625, %v1613
        %v1627 = vpop.permute.xlu0 %1626
        %1628 = vset.pattern.permute.xlu0 0
        %1629 = vperm.xlu0 %1628, %v1614
        %v1630 = vpop.permute.xlu0 %1629
        %1631 = vset.pattern.permute.xlu0 0
        %1632 = vperm.xlu0 %1631, %v1615
        %v1633 = vpop.permute.xlu0 %1632
        %1634 = vset.pattern.permute.xlu0 0
        %1635 = vperm.xlu0 %1634, %v1616
        %v1636 = vpop.permute.xlu0 %1635
        %1637 = vset.pattern.permute.xlu0 0
        %1638 = vperm.xlu0 %1637, %v1617
        %v1639 = vpop.permute.xlu0 %1638
        %1640 = vset.pattern.permute.xlu0 0
        %1641 = vperm.xlu0 %1640, %v1618
        %v1642 = vpop.permute.xlu0 %1641
        %vm1643 = vcmp.eq.s32.totalorder %v1621, 1
        %vm1644 = vcmp.eq.s32.totalorder %v1624, 1
        %vm1645 = vcmp.eq.s32.totalorder %v1627, 1
        %vm1646 = vcmp.eq.s32.totalorder %v1630, 1
        %vm1647 = vcmp.eq.s32.totalorder %v1633, 1
        %vm1648 = vcmp.eq.s32.totalorder %v1636, 1
        %vm1649 = vcmp.eq.s32.totalorder %v1639, 1
        %vm1650 = vcmp.eq.s32.totalorder %v1642, 1
        %v1651 = vsel %vm1643, %v387, -3e+38
        %v1652 = vsel %vm1644, %v390, -3e+38
        %v1653 = vsel %vm1645, %v395, -3e+38
        %v1654 = vsel %vm1646, %v398, -3e+38
        %v1655 = vsel %vm1647, %v403, -3e+38
        %v1656 = vsel %vm1648, %v406, -3e+38
        %v1657 = vsel %vm1649, %v411, -3e+38
        %v1658 = vsel %vm1650, %v414, -3e+38
        %v1659 = vsel %vm418, %v1651, -inf
        %v1660 = vsel %vm418, %v1652, -inf
        %v1661 = vsel %vm418, %v1653, -inf
        %v1662 = vsel %vm418, %v1654, -inf
        %v1663 = vsel %vm418, %v1655, -inf
        %v1664 = vmax.f32 %v1659, %v1663
        %v1665 = vsel %vm418, %v1656, -inf
        %v1666 = vmax.f32 %v1660, %v1665
        %v1667 = vsel %vm418, %v1657, -inf
        %v1668 = vmax.f32 %v1661, %v1667
        %v1669 = vsel %vm418, %v1658, -inf
        %v1670 = vmax.f32 %v1662, %v1669
        %v1671 = vmax.f32 %v1664, %v1666
        %v1672 = vmax.f32 %v1668, %v1670
        %v1673 = vmax.f32 %v1671, %v1672
        %v1674 = vrot.slane %v1673, 4
        %v1675 = vmax.f32 %v1673, %v1674
        %v1676 = vrot.slane %v1675, 2
        %v1677 = vmax.f32 %v1675, %v1676
        %v1678 = vrot.slane %v1677, 1
        %v1679 = vmax.f32 %v1677, %v1678
        %v1680 = vld [vmem:[#allocation4 + $0xe] sm:$0x1]
        %v1681 = vmax.f32 %v1680, %v1679
        %1682 = vst.msk [vmem:[#allocation4 + $0xe] sm:$0x1] %vm441, %v1681
        %vm1683 = vcmp.eq.s32.totalorder %v475, 15
        %vm1684 = vcmp.eq.s32.totalorder %v476, 15
        %vm1685 = vcmp.eq.s32.totalorder %v477, 15
        %vm1686 = vcmp.eq.s32.totalorder %v478, 15
        %vm1687 = vcmp.eq.s32.totalorder %v479, 15
        %vm1688 = vcmp.eq.s32.totalorder %v480, 15
        %vm1689 = vcmp.eq.s32.totalorder %v481, 15
        %vm1690 = vcmp.eq.s32.totalorder %v482, 15
        %v1691 = vsel %vm1683, 1, 0
        %v1692 = vsel %vm1684, 1, 0
        %v1693 = vsel %vm1685, 1, 0
        %v1694 = vsel %vm1686, 1, 0
        %v1695 = vsel %vm1687, 1, 0
        %v1696 = vsel %vm1688, 1, 0
        %v1697 = vsel %vm1689, 1, 0
        %v1698 = vsel %vm1690, 1, 0
        %1699 = vset.pattern.permute.xlu0 0
        %1700 = vperm.xlu0 %1699, %v1691
        %v1701 = vpop.permute.xlu0 %1700
        %1702 = vset.pattern.permute.xlu0 0
        %1703 = vperm.xlu0 %1702, %v1692
        %v1704 = vpop.permute.xlu0 %1703
        %1705 = vset.pattern.permute.xlu0 0
        %1706 = vperm.xlu0 %1705, %v1693
        %v1707 = vpop.permute.xlu0 %1706
        %1708 = vset.pattern.permute.xlu0 0
        %1709 = vperm.xlu0 %1708, %v1694
        %v1710 = vpop.permute.xlu0 %1709
        %1711 = vset.pattern.permute.xlu0 0
        %1712 = vperm.xlu0 %1711, %v1695
        %v1713 = vpop.permute.xlu0 %1712
        %1714 = vset.pattern.permute.xlu0 0
        %1715 = vperm.xlu0 %1714, %v1696
        %v1716 = vpop.permute.xlu0 %1715
        %1717 = vset.pattern.permute.xlu0 0
        %1718 = vperm.xlu0 %1717, %v1697
        %v1719 = vpop.permute.xlu0 %1718
        %1720 = vset.pattern.permute.xlu0 0
        %1721 = vperm.xlu0 %1720, %v1698
        %v1722 = vpop.permute.xlu0 %1721
        %vm1723 = vcmp.eq.s32.totalorder %v1701, 1
        %vm1724 = vcmp.eq.s32.totalorder %v1704, 1
        %vm1725 = vcmp.eq.s32.totalorder %v1707, 1
        %vm1726 = vcmp.eq.s32.totalorder %v1710, 1
        %vm1727 = vcmp.eq.s32.totalorder %v1713, 1
        %vm1728 = vcmp.eq.s32.totalorder %v1716, 1
        %vm1729 = vcmp.eq.s32.totalorder %v1719, 1
        %vm1730 = vcmp.eq.s32.totalorder %v1722, 1
        %v1731 = vsel %vm1723, %v387, -3e+38
        %v1732 = vsel %vm1724, %v390, -3e+38
        %v1733 = vsel %vm1725, %v395, -3e+38
        %v1734 = vsel %vm1726, %v398, -3e+38
        %v1735 = vsel %vm1727, %v403, -3e+38
        %v1736 = vsel %vm1728, %v406, -3e+38
        %v1737 = vsel %vm1729, %v411, -3e+38
        %v1738 = vsel %vm1730, %v414, -3e+38
        %v1739 = vsel %vm418, %v1731, -inf
        %v1740 = vsel %vm418, %v1732, -inf
        %v1741 = vsel %vm418, %v1733, -inf
        %v1742 = vsel %vm418, %v1734, -inf
        %v1743 = vsel %vm418, %v1735, -inf
        %v1744 = vmax.f32 %v1739, %v1743
        %v1745 = vsel %vm418, %v1736, -inf
        %v1746 = vmax.f32 %v1740, %v1745
        %v1747 = vsel %vm418, %v1737, -inf
        %v1748 = vmax.f32 %v1741, %v1747
        %v1749 = vsel %vm418, %v1738, -inf
        %v1750 = vmax.f32 %v1742, %v1749
        %v1751 = vmax.f32 %v1744, %v1746
        %v1752 = vmax.f32 %v1748, %v1750
        %v1753 = vmax.f32 %v1751, %v1752
        %v1754 = vrot.slane %v1753, 4
        %v1755 = vmax.f32 %v1753, %v1754
        %v1756 = vrot.slane %v1755, 2
        %v1757 = vmax.f32 %v1755, %v1756
        %v1758 = vrot.slane %v1757, 1
        %v1759 = vmax.f32 %v1757, %v1758
        %v1760 = vld [vmem:[#allocation4 + $0xf] sm:$0x1]
        %v1761 = vmax.f32 %v1760, %v1759
        %1762 = vst.msk [vmem:[#allocation4 + $0xf] sm:$0x1] %vm441, %v1761
        %p1763 = scmp.eq.s32.totalorder %s28, 3
        // Predicated region
        $region45: #{tpu_custom_call.1} parent=39 // pred_check
          %p1764 = pneg %p1763
        $region46: #{tpu_custom_call.1} parent=39 // pred_check_branch
          %1766 = sbr.rel (%p1764) target = $region48
        $region47: #{tpu_custom_call.1} parent=39 // pred_region
          %v1767 = vld [vmem:[#allocation2] sm:$0x1]
          %v1768 = vmul.f32 %v1767, 0.005
          %v1769 = vld [vmem:[#allocation3] sm:$0x1]
          %v1770 = vmul.f32 %v1769, 0.005
          %v1771 = vmul.f32 %v1768, %v1768
          %v1772 = vsub.f32 %v1770, %v1771
          %v1773 = vmax.f32 %v1772, 0.0
          %v1774 = vld [vmem:[%s4] sm:$0x1]
          %v1775 = vadd.f32 %v1773, 0.001
          %v1776 = vrsqrt.pop %v1775
          %v1777 = vmul.f32 %v1774, %v1776
          %v1778 = vld [vmem:[%s5] sm:$0x1]
          %v1779 = vmul.f32 %v1768, %v1777
          %v1780 = vsub.f32 %v1778, %v1779
          %1781 = vst.msk [vmem:[#allocation8] sm:$0x1] %vm441, %v1777
          %1782 = vst.msk [vmem:[#allocation10] sm:$0x1] %vm441, %v1780
          %v1783 = vld [vmem:[#allocation4] sm:$0xff]
          %v1784 = vld [vmem:[#allocation4 + $0x8] sm:$0xff]
          %vm1785 = vcmp.gt.f32.partialorder %v1783, -1.5e+38
          %vm1786 = vcmp.gt.f32.partialorder %v1784, -1.5e+38
          %v1788 = vlaneseq
          %v1789 = vshrl.u32 %v1788, 7
          %v1790 = vsub.s32 0, %v1789
          %v1791 = vrot.slane %v1777, %v1790
          %v1793 = vmul.f32 %v1783, %v1791
          %v1794 = vmul.f32 %v1784, %v1791
          %v1796 = vlaneseq
          %v1797 = vshrl.u32 %v1796, 7
          %v1798 = vsub.s32 0, %v1797
          %v1799 = vrot.slane %v1780, %v1798
          %v1801 = vadd.f32 %v1793, %v1799
          %v1802 = vadd.f32 %v1794, %v1799
          %v1803 = vmax.f32 %v1801, 0.0
          %v1804 = vmax.f32 %v1802, 0.0
          %v1805 = vsel %vm1785, %v1803, 0.0
          %v1806 = vsel %vm1786, %v1804, 0.0
          %1807 = vst.msk [vmem:[#allocation12] sm:$0xff] %vm418, %v1805
          %1808 = vst.msk [vmem:[#allocation12 + $0x8] sm:$0xff] %vm418, %v1806
        $region48: #{tpu_custom_call.1} parent=39 // pred_fallthru
          _
        // Predicated region
        $region49: #{tpu_custom_call.1} parent=39 // pred_check
          %p1809 = pneg %p156
        $region50: #{tpu_custom_call.1} parent=39 // pred_check_branch
          %1811 = sbr.rel (%p1809) target = $region52
        $region51: #{tpu_custom_call.1} parent=39 // pred_region
          %s1813 = ssub.s32 16, 16
          %1814 = vsyncadd [#allocation9], %s1813
          %s1816 = sshll.u32 [#allocation8], 4
          %s1817 = int_to_ptr.vmem [resolvable:$true] %s1816
          %1819 = dma.vmem_to_hbm [thread:$0]  %s1817, 16, %s6, [#allocation9]
        $region52: #{tpu_custom_call.1} parent=39 // pred_fallthru
          _
        // Predicated region
        $region53: #{tpu_custom_call.1} parent=39 // pred_check
          %p1820 = pneg %p177
        $region54: #{tpu_custom_call.1} parent=39 // pred_check_branch
          %1822 = sbr.rel (%p1820) target = $region56
        $region55: #{tpu_custom_call.1} parent=39 // pred_region
          %s1824 = ssub.s32 16, 16
          %1825 = vsyncadd [#allocation11], %s1824
          %s1827 = sshll.u32 [#allocation10], 4
          %s1828 = int_to_ptr.vmem [resolvable:$true] %s1827
          %1830 = dma.vmem_to_hbm [thread:$0]  %s1828, 16, %s7, [#allocation11]
        $region56: #{tpu_custom_call.1} parent=39 // pred_fallthru
          _
        // Predicated region
        $region57: #{tpu_custom_call.1} parent=39 // pred_check
          %p1831 = pneg %p198
        $region58: #{tpu_custom_call.1} parent=39 // pred_check_branch
          %1833 = sbr.rel (%p1831) target = $region60
        $region59: #{tpu_custom_call.1} parent=39 // pred_region
          %s1835 = ssub.s32 256, 256
          %1836 = vsyncadd [#allocation11], %s1835
          %s1837 = sshll.u32 [#allocation12], 4
          %s1838 = int_to_ptr.vmem [resolvable:$true] %s1837
          %1843 = dma.vmem_to_hbm [thread:$0]  %s1838, 256, %s8, [#allocation11], 128, 128, 8
        $region60: #{tpu_custom_call.1} parent=39 // pred_fallthru
          _
        // Predicated region
        $region61: #{tpu_custom_call.1} parent=39 // pred_check
          %p1844 = pneg %p156
        $region62: #{tpu_custom_call.1} parent=39 // pred_check_branch
          %1846 = sbr.rel (%p1844) target = $region64
        $region63: #{tpu_custom_call.1} parent=39 // pred_region
          %1847 = dma.done [#allocation9], 16
        $region64: #{tpu_custom_call.1} parent=39 // pred_fallthru
          _
        // Predicated region
        $region65: #{tpu_custom_call.1} parent=39 // pred_check
          %p1848 = pneg %p177
        $region66: #{tpu_custom_call.1} parent=39 // pred_check_branch
          %1850 = sbr.rel (%p1848) target = $region68
        $region67: #{tpu_custom_call.1} parent=39 // pred_region
          %1851 = dma.done [#allocation11], 16
        $region68: #{tpu_custom_call.1} parent=39 // pred_fallthru
          _
        // Predicated region
        $region69: #{tpu_custom_call.1} parent=39 // pred_check
          %p1852 = pneg %p198
        $region70: #{tpu_custom_call.1} parent=39 // pred_check_branch
          %1854 = sbr.rel (%p1852) target = $region72
        $region71: #{tpu_custom_call.1} parent=39 // pred_region
          %1855 = dma.done [#allocation11], 256
        $region72: #{tpu_custom_call.1} parent=39 // pred_fallthru
          _
      $region40: #{tpu_custom_call.1} parent=5 // pred_fallthru
        _
      %p1856 = scmp.le.s32.totalorder 2, %s23
      // Predicated region
      $region73: #{tpu_custom_call.1} parent=5 // pred_check
        %p1857 = pneg %p1856
      $region74: #{tpu_custom_call.1} parent=5 // pred_check_branch
        %1859 = sbr.rel (%p1857) target = $region76
      $region75: #{tpu_custom_call.1} parent=5 // pred_region
        %s1860 = ssub.s32 %s23, 2
      $region76: #{tpu_custom_call.1} parent=5 // pred_fallthru
        _
    $region6: #{tpu_custom_call.1} parent=1 // loop_footer
      %s27 = sadd.s32 1, %s23
    $region7: #{tpu_custom_call.1} parent=1 // loop_footer_branch
      %22 = sbr.rel target = $region3
    $region8: #{tpu_custom_call.1} parent=1 // loop_exit
      _
    %1861 = vsyncpa [#allocation9], 1
    %s1862 = scalar_lea.sflag [#allocation9], 1
    %1863 = vsyncpa %s1862, 1
    %1864 = vsyncpa [#allocation11], 1

</llo_original>
